<compile_context>
chip_gen: v7x
topology: tpu7x:2x2x1
jax: 0.10.0
libtpu: 0.0.40
codegen_flags: <defaults>
</compile_context>

<pallas_src>
import math

import jax
import jax.numpy as jnp
from jax.experimental import pallas as pl
from jax.experimental.pallas import tpu as pltpu


_LANE = 128
_SUBLANE = 8


def _round_up(n, m):
    return ((n + m - 1) // m) * m


def _pad2d(a, rows, cols):
    r, c = a.shape
    if r == rows and c == cols:
        return a
    return jnp.pad(a, ((0, rows - r), (0, cols - c)))


def _wrap_i32(v):
    v &= 0xFFFFFFFF
    return v - 0x100000000 if v >= 0x80000000 else v


# int32-wrapped mixing constants for the counter-based hash
_C_ROW = _wrap_i32(0x9E3779B9)
_C_COL = _wrap_i32(0x85EBCA6B)
_C_SEED = _wrap_i32(0xC2B2AE35)
_C_M1 = _wrap_i32(0x7FEB352D)
_C_M2 = _wrap_i32(0x846CA68B)


def _make_denoise_kernel(num_in_layers, num_out_layers, norm, mess_dropout,
                         keep_prob, b_tile):
    """Builds a kernel for a fixed (static) layer structure."""
    inv_keep = (1.0 / keep_prob) if keep_prob > 0.0 else 0.0

    def kernel(seed_ref, x_ref, temb_ref, w_emb_ref, b_emb_ref, *refs):
        out_ref = refs[-1]
        params = refs[:-1]

        # emb = emb_layer(time_emb); accumulate / bias-add in f32.
        emb = jnp.dot(temb_ref[...], w_emb_ref[...],
                      preferred_element_type=jnp.float32) + b_emb_ref[...]

        x = x_ref[...].astype(jnp.float32)

        if norm:
            # F.normalize(x, p=2, dim=-1) via rsqrt of clamped squared norm.
            sumsq = jnp.sum(x * x, axis=-1, keepdims=True)
            x = x * jax.lax.rsqrt(jnp.maximum(sumsq, 1e-24))

        if mess_dropout and keep_prob < 1.0:
            # Counter-based integer hash -> Bernoulli(keep_prob) mask, keyed on
            # the *global* row index so the mask is independent of tiling.
            # TODO(synk): mask bit-stream differs from torch.nn.Dropout's RNG
            # (semantics -- Bernoulli keep, 1/keep_prob scaling -- are identical).
            tile_base = pl.program_id(0) * b_tile
            rows = jax.lax.broadcasted_iota(jnp.int32, x.shape, 0) + tile_base
            cols = jax.lax.broadcasted_iota(jnp.int32, x.shape, 1)
            h = rows * _C_ROW + cols * _C_COL + seed_ref[0] * _C_SEED
            h = h ^ jnp.right_shift(h, 15)
            h = h * _C_M1
            h = h ^ jnp.right_shift(h, 13)
            h = h * _C_M2
            h = h ^ jnp.right_shift(h, 16)
            u = jnp.bitwise_and(h, 0x7FFFFFFF).astype(jnp.float32) * (
                1.0 / 2147483648.0)
            x = jnp.where(u < keep_prob, x * inv_keep, 0.0)

        cdt = x_ref.dtype            # matmul operand dtype (f32 or bf16)
        x_in = x.astype(cdt)
        emb_in = emb.astype(cdt)

        # First in_layer on concat([x, emb], -1), done as a split matmul.
        w0x, w0e, b0 = params[0][...], params[1][...], params[2][...]
        h = (jnp.dot(x_in, w0x, preferred_element_type=jnp.float32)
             + jnp.dot(emb_in, w0e, preferred_element_type=jnp.float32)
             + b0)
        h = jnp.tanh(h)

        idx = 3
        for _ in range(1, num_in_layers):
            w, b = params[idx][...], params[idx + 1][...]
            idx += 2
            h = jnp.tanh(
                jnp.dot(h.astype(w.dtype), w,
                        preferred_element_type=jnp.float32) + b)

        for i in range(num_out_layers):
            w, b = params[idx][...], params[idx + 1][...]
            idx += 2
            h = jnp.dot(h.astype(w.dtype), w,
                        preferred_element_type=jnp.float32) + b
            if i != num_out_layers - 1:
                h = jnp.tanh(h)

        out_ref[...] = h.astype(out_ref.dtype)

    return kernel


def init_denoise_params(key, in_dims, out_dims, emb_size):
    """Init mirroring Denoise.init_weights (normal(0, sqrt(2/(fi+fo)))), biases N(0, 1e-3)."""

    def linear(k, d_in, d_out):
        kw, kb = jax.random.split(k)
        std = math.sqrt(2.0 / (d_in + d_out))
        w = std * jax.random.normal(kw, (d_in, d_out), dtype=jnp.float32)
        b = 0.001 * jax.random.normal(kb, (1, d_out), dtype=jnp.float32)
        return w, b

    in_dims_temp = [in_dims[0] + emb_size] + list(in_dims[1:])
    out_dims_temp = list(out_dims)
    n_keys = 1 + (len(in_dims_temp) - 1) + (len(out_dims_temp) - 1)
    keys = iter(jax.random.split(key, n_keys))
    return {
        "emb": linear(next(keys), emb_size, emb_size),
        "in_layers": [linear(next(keys), di, do)
                      for di, do in zip(in_dims_temp[:-1], in_dims_temp[1:])],
        "out_layers": [linear(next(keys), di, do)
                       for di, do in zip(out_dims_temp[:-1], out_dims_temp[1:])],
        "in_dims": list(in_dims),
        "out_dims": list(out_dims),
        "emb_size": emb_size,
    }


def _time_embedding(timesteps, emb_size):
    # Sinusoidal time-embedding glue built in plain JAX (tiny, one-off).
    half = emb_size // 2
    freqs = jnp.exp(-math.log(10000.0)
                    * jnp.arange(half, dtype=jnp.float32) / half)
    temp = timesteps[:, None].astype(jnp.float32) * freqs[None]
    time_emb = jnp.concatenate([jnp.cos(temp), jnp.sin(temp)], axis=-1)
    if emb_size % 2:
        time_emb = jnp.concatenate(
            [time_emb, jnp.zeros_like(time_emb[:, :1])], axis=-1)
    return time_emb


def denoise_forward(params, x, timesteps, mess_dropout=True, norm=False,
                    dropout=0.5, seed=0, io_dtype=jnp.float32, b_tile=512):
    emb_size = params["emb_size"]
    d_x = params["in_dims"][0]
    out_dim = params["out_dims"][-1]
    batch = x.shape[0]

    # ---- lane padding: every feature dim -> multiple of 128 ----------------
    d_x_p = _round_up(d_x, _LANE)
    emb_p = _round_up(emb_size, _LANE)

    w_emb, b_emb = params["emb"]
    in_layers, out_layers = params["in_layers"], params["out_layers"]

    w_emb_p = _pad2d(w_emb, emb_p, emb_p).astype(io_dtype)
    b_emb_p = _pad2d(b_emb, 1, emb_p)                       # biases stay f32

    w0, b0 = in_layers[0]
    h1_p = _round_up(w0.shape[1], _LANE)
    flat = [
        _pad2d(w0[:d_x], d_x_p, h1_p).astype(io_dtype),     # rows hitting x
        _pad2d(w0[d_x:], emb_p, h1_p).astype(io_dtype),     # rows hitting emb
        _pad2d(b0, 1, h1_p),
    ]
    matmul_dims = [(emb_p, emb_p), (d_x_p, h1_p), (emb_p, h1_p)]
    tanh_widths = [h1_p]
    for w, b in in_layers[1:]:
        di_p, do_p = _round_up(w.shape[0], _LANE), _round_up(w.shape[1], _LANE)
        flat += [_pad2d(w, di_p, do_p).astype(io_dtype), _pad2d(b, 1, do_p)]
        matmul_dims.append((di_p, do_p))
        tanh_widths.append(do_p)
    for i, (w, b) in enumerate(out_layers):
        di_p, do_p = _round_up(w.shape[0], _LANE), _round_up(w.shape[1], _LANE)
        flat += [_pad2d(w, di_p, do_p).astype(io_dtype), _pad2d(b, 1, do_p)]
        matmul_dims.append((di_p, do_p))
        if i != len(out_layers) - 1:
            tanh_widths.append(do_p)
    d_out_p = _round_up(out_dim, _LANE)

    # ---- batch tiling -------------------------------------------------------
    if batch >= b_tile:
        bt = b_tile
    else:
        bt = _round_up(max(batch, _SUBLANE), _SUBLANE)
    b_pad = _round_up(batch, bt)
    grid = (b_pad // bt,)

    time_emb = _time_embedding(timesteps, emb_size)
    x_p = _pad2d(x.astype(jnp.float32), b_pad, d_x_p).astype(io_dtype)
    temb_p = _pad2d(time_emb, b_pad, emb_p).astype(io_dtype)

    # ---- specs --------------------------------------------------------------
    def batch_spec(cols):
        return pl.BlockSpec((bt, cols), lambda i: (i, 0))

    def const_spec(arr):
        return pl.BlockSpec(arr.shape, lambda i: (0, 0))

    in_specs = [pl.BlockSpec(memory_space=pltpu.MemorySpace.SMEM),  # seed
                batch_spec(d_x_p), batch_spec(emb_p),
                const_spec(w_emb_p), const_spec(b_emb_p)]
    in_specs += [const_spec(a) for a in flat]
    out_spec = batch_spec(d_out_p)

    # ---- cost estimate + VMEM budget ----------------------------------------
    itemsize = jnp.dtype(io_dtype).itemsize
    flops = 2 * b_pad * sum(a * b for a, b in matmul_dims)
    transcendentals = b_pad * sum(tanh_widths)
    in_arrays = [x_p, temb_p, w_emb_p, b_emb_p] + flat
    bytes_accessed = sum(int(a.size) * a.dtype.itemsize for a in in_arrays)
    bytes_accessed += b_pad * d_out_p * itemsize
    cost = pl.CostEstimate(flops=int(flops),
                           transcendentals=int(transcendentals),
                           bytes_accessed=int(bytes_accessed))

    weight_bytes = sum(int(a.size) * a.dtype.itemsize
                       for a in [w_emb_p, b_emb_p] + flat)
    tile_io_bytes = bt * (d_x_p + emb_p + d_out_p) * itemsize
    max_w = max([d_x_p, emb_p, d_out_p] + [b for _, b in matmul_dims])
    scratch_bytes = 6 * bt * max_w * 4
    vmem_limit = min(max(2 * (weight_bytes + 2 * tile_io_bytes) + scratch_bytes,
                         16 * 1024 * 1024),
                     48 * 1024 * 1024)          # safe on v5e/v6e/v7x

    compiler_params = pltpu.CompilerParams(
        dimension_semantics=("parallel",),       # shard batch grid over 2 TCs on v7x
        vmem_limit_bytes=int(vmem_limit),
    )

    kernel = _make_denoise_kernel(len(in_layers), len(out_layers), norm,
                                  mess_dropout, 1.0 - dropout, bt)
    seed_arr = jnp.array([seed], dtype=jnp.int32)

    out = pl.pallas_call(
        kernel,
        grid=grid,
        out_shape=jax.ShapeDtypeStruct((b_pad, d_out_p), io_dtype),
        in_specs=in_specs,
        out_specs=out_spec,
        compiler_params=compiler_params,
        cost_estimate=cost,
    )(seed_arr, x_p, temb_p, w_emb_p, b_emb_p, *flat)

    return out[:batch, :out_dim]


def denoise_reference(params, x, timesteps, norm=False):
    """Pure-JAX reference for the mess_dropout=False path."""
    time_emb = _time_embedding(timesteps, params["emb_size"])
    w_emb, b_emb = params["emb"]
    emb = time_emb @ w_emb + b_emb
    if norm:
        x = x / jnp.maximum(jnp.linalg.norm(x, axis=-1, keepdims=True), 1e-12)
    h = jnp.concatenate([x, emb], axis=-1)
    for w, b in params["in_layers"]:
        h = jnp.tanh(h @ w + b)
    out_layers = params["out_layers"]
    for i, (w, b) in enumerate(out_layers):
        h = h @ w + b
        if i != len(out_layers) - 1:
            h = jnp.tanh(h)
    return h


if __name__ == "__main__":
    key = jax.random.PRNGKey(0)
    k_param, k_x, k_t = jax.random.split(key, 3)

    # Small config: Denoise(in_dims=[64, 48, 32], out_dims=[32, 48, 64], emb_size=16)
    in_dims = [64, 48, 32]
    out_dims = [32, 48, 64]
    emb_size = 16
    batch = 24           # b_tile=8 below -> 3 grid steps, exercises the batch grid

    params = init_denoise_params(k_param, in_dims, out_dims, emb_size)
    x = jax.random.normal(k_x, (batch, in_dims[0]), dtype=jnp.float32)
    timesteps = jax.random.randint(k_t, (batch,), 0, 1000)

    # Deterministic f32 path (dropout off) vs pure-JAX reference.
    y = denoise_forward(params, x, timesteps, mess_dropout=False, b_tile=8)
    y_ref = denoise_reference(params, x, timesteps)
    assert y.shape == y_ref.shape
    assert jnp.allclose(y, y_ref, atol=1e-4, rtol=1e-3), "mismatch vs reference"

    # norm=True path.
    y_n = denoise_forward(params, x, timesteps, mess_dropout=False, norm=True,
                          b_tile=8)
    y_ref_n = denoise_reference(params, x, timesteps, norm=True)
    assert jnp.allclose(y_n, y_ref_n, atol=1e-4, rtol=1e-3), \
        "mismatch vs reference (norm)"

    # Training-mode forward: dropout on + bf16 matmul I/O (mem-bound roofline win).
    y_tr = denoise_forward(params, x, timesteps, mess_dropout=True, norm=False,
                           seed=0, io_dtype=jnp.bfloat16, b_tile=8)
    jax.block_until_ready(y_tr)
    assert y_tr.shape == (batch, out_dims[-1])
    assert bool(jnp.all(jnp.isfinite(y_tr.astype(jnp.float32))))

    print("KERNEL_OK")
</pallas_src>

<mosaic_0001>
module attributes {stable_mosaic.version = 11 : i64} {
  func.func @kernel(%arg0: i32, %arg1: memref<1xi32, #tpu.memory_space<smem>>, %arg2: memref<8x128xf32, #tpu.memory_space<vmem>>, %arg3: memref<8x128xf32, #tpu.memory_space<vmem>>, %arg4: memref<128x128xf32, #tpu.memory_space<vmem>>, %arg5: memref<1x128xf32, #tpu.memory_space<vmem>>, %arg6: memref<128x128xf32, #tpu.memory_space<vmem>>, %arg7: memref<128x128xf32, #tpu.memory_space<vmem>>, %arg8: memref<1x128xf32, #tpu.memory_space<vmem>>, %arg9: memref<128x128xf32, #tpu.memory_space<vmem>>, %arg10: memref<1x128xf32, #tpu.memory_space<vmem>>, %arg11: memref<128x128xf32, #tpu.memory_space<vmem>>, %arg12: memref<1x128xf32, #tpu.memory_space<vmem>>, %arg13: memref<128x128xf32, #tpu.memory_space<vmem>>, %arg14: memref<1x128xf32, #tpu.memory_space<vmem>>, %arg15: memref<8x128xf32, #tpu.memory_space<vmem>>) attributes {dimension_semantics = [#tpu.dimension_semantics<parallel>], iteration_bounds = array<i64: 3>, scalar_prefetch = 0 : i64, scratch_operands = 0 : i64, tpu.core_type = #tpu.core_type<tc>, window_params = [{transform_indices = @transform_0, window_bounds = array<i64: 1>}, {transform_indices = @transform_1, window_bounds = array<i64: 8, 128>}, {transform_indices = @transform_2, window_bounds = array<i64: 8, 128>}, {pipeline_mode = #tpu.pipeline_mode<synchronous>, transform_indices = @transform_3, window_bounds = array<i64: 128, 128>}, {pipeline_mode = #tpu.pipeline_mode<synchronous>, transform_indices = @transform_4, window_bounds = array<i64: 1, 128>}, {pipeline_mode = #tpu.pipeline_mode<synchronous>, transform_indices = @transform_5, window_bounds = array<i64: 128, 128>}, {pipeline_mode = #tpu.pipeline_mode<synchronous>, transform_indices = @transform_6, window_bounds = array<i64: 128, 128>}, {pipeline_mode = #tpu.pipeline_mode<synchronous>, transform_indices = @transform_7, window_bounds = array<i64: 1, 128>}, {pipeline_mode = #tpu.pipeline_mode<synchronous>, transform_indices = @transform_8, window_bounds = array<i64: 128, 128>}, {pipeline_mode = #tpu.pipeline_mode<synchronous>, transform_indices = @transform_9, window_bounds = array<i64: 1, 128>}, {pipeline_mode = #tpu.pipeline_mode<synchronous>, transform_indices = @transform_10, window_bounds = array<i64: 128, 128>}, {pipeline_mode = #tpu.pipeline_mode<synchronous>, transform_indices = @transform_11, window_bounds = array<i64: 1, 128>}, {pipeline_mode = #tpu.pipeline_mode<synchronous>, transform_indices = @transform_12, window_bounds = array<i64: 128, 128>}, {pipeline_mode = #tpu.pipeline_mode<synchronous>, transform_indices = @transform_13, window_bounds = array<i64: 1, 128>}, {transform_indices = @transform_14, window_bounds = array<i64: 8, 128>}]} {
    %c0 = arith.constant 0 : index
    %c0_0 = arith.constant 0 : index
    %0 = vector.load %arg3[%c0, %c0_0] : memref<8x128xf32, #tpu.memory_space<vmem>>, vector<8x128xf32>
    %c0_1 = arith.constant 0 : index
    %c0_2 = arith.constant 0 : index
    %1 = vector.load %arg4[%c0_1, %c0_2] : memref<128x128xf32, #tpu.memory_space<vmem>>, vector<128x128xf32>
    %cst = arith.constant dense<0.000000e+00> : vector<8x128xf32>
    %2 = tpu.matmul %0, %1, %cst {dimension_numbers = #tpu.dot_dimension_numbers<[1], [0], [0], [1], [0, 0, 1, 1], [], []>} : vector<8x128xf32>, vector<128x128xf32>, vector<8x128xf32> -> vector<8x128xf32>
    %c0_3 = arith.constant 0 : index
    %c0_4 = arith.constant 0 : index
    %3 = vector.load %arg5[%c0_3, %c0_4] : memref<1x128xf32, #tpu.memory_space<vmem>>, vector<1x128xf32>
    %4 = vector.broadcast %3 : vector<1x128xf32> to vector<8x128xf32>
    %5 = arith.addf %2, %4 : vector<8x128xf32>
    %c0_5 = arith.constant 0 : index
    %c0_6 = arith.constant 0 : index
    %6 = vector.load %arg2[%c0_5, %c0_6] : memref<8x128xf32, #tpu.memory_space<vmem>>, vector<8x128xf32>
    %c0_7 = arith.constant 0 : index
    %c0_8 = arith.constant 0 : index
    %7 = vector.load %arg6[%c0_7, %c0_8] : memref<128x128xf32, #tpu.memory_space<vmem>>, vector<128x128xf32>
    %c0_9 = arith.constant 0 : index
    %c0_10 = arith.constant 0 : index
    %8 = vector.load %arg7[%c0_9, %c0_10] : memref<128x128xf32, #tpu.memory_space<vmem>>, vector<128x128xf32>
    %c0_11 = arith.constant 0 : index
    %c0_12 = arith.constant 0 : index
    %9 = vector.load %arg8[%c0_11, %c0_12] : memref<1x128xf32, #tpu.memory_space<vmem>>, vector<1x128xf32>
    %cst_13 = arith.constant dense<0.000000e+00> : vector<8x128xf32>
    %10 = tpu.matmul %6, %7, %cst_13 {dimension_numbers = #tpu.dot_dimension_numbers<[1], [0], [0], [1], [0, 0, 1, 1], [], []>} : vector<8x128xf32>, vector<128x128xf32>, vector<8x128xf32> -> vector<8x128xf32>
    %cst_14 = arith.constant dense<0.000000e+00> : vector<8x128xf32>
    %11 = tpu.matmul %5, %8, %cst_14 {dimension_numbers = #tpu.dot_dimension_numbers<[1], [0], [0], [1], [0, 0, 1, 1], [], []>} : vector<8x128xf32>, vector<128x128xf32>, vector<8x128xf32> -> vector<8x128xf32>
    %12 = arith.addf %10, %11 : vector<8x128xf32>
    %13 = vector.broadcast %9 : vector<1x128xf32> to vector<8x128xf32>
    %14 = arith.addf %12, %13 : vector<8x128xf32>
    %15 = math.tanh %14 : vector<8x128xf32>
    %c0_15 = arith.constant 0 : index
    %c0_16 = arith.constant 0 : index
    %16 = vector.load %arg9[%c0_15, %c0_16] : memref<128x128xf32, #tpu.memory_space<vmem>>, vector<128x128xf32>
    %c0_17 = arith.constant 0 : index
    %c0_18 = arith.constant 0 : index
    %17 = vector.load %arg10[%c0_17, %c0_18] : memref<1x128xf32, #tpu.memory_space<vmem>>, vector<1x128xf32>
    %cst_19 = arith.constant dense<0.000000e+00> : vector<8x128xf32>
    %18 = tpu.matmul %15, %16, %cst_19 {dimension_numbers = #tpu.dot_dimension_numbers<[1], [0], [0], [1], [0, 0, 1, 1], [], []>} : vector<8x128xf32>, vector<128x128xf32>, vector<8x128xf32> -> vector<8x128xf32>
    %19 = vector.broadcast %17 : vector<1x128xf32> to vector<8x128xf32>
    %20 = arith.addf %18, %19 : vector<8x128xf32>
    %21 = math.tanh %20 : vector<8x128xf32>
    %c0_20 = arith.constant 0 : index
    %c0_21 = arith.constant 0 : index
    %22 = vector.load %arg11[%c0_20, %c0_21] : memref<128x128xf32, #tpu.memory_space<vmem>>, vector<128x128xf32>
    %c0_22 = arith.constant 0 : index
    %c0_23 = arith.constant 0 : index
    %23 = vector.load %arg12[%c0_22, %c0_23] : memref<1x128xf32, #tpu.memory_space<vmem>>, vector<1x128xf32>
    %cst_24 = arith.constant dense<0.000000e+00> : vector<8x128xf32>
    %24 = tpu.matmul %21, %22, %cst_24 {dimension_numbers = #tpu.dot_dimension_numbers<[1], [0], [0], [1], [0, 0, 1, 1], [], []>} : vector<8x128xf32>, vector<128x128xf32>, vector<8x128xf32> -> vector<8x128xf32>
    %25 = vector.broadcast %23 : vector<1x128xf32> to vector<8x128xf32>
    %26 = arith.addf %24, %25 : vector<8x128xf32>
    %27 = math.tanh %26 : vector<8x128xf32>
    %c0_25 = arith.constant 0 : index
    %c0_26 = arith.constant 0 : index
    %28 = vector.load %arg13[%c0_25, %c0_26] : memref<128x128xf32, #tpu.memory_space<vmem>>, vector<128x128xf32>
    %c0_27 = arith.constant 0 : index
    %c0_28 = arith.constant 0 : index
    %29 = vector.load %arg14[%c0_27, %c0_28] : memref<1x128xf32, #tpu.memory_space<vmem>>, vector<1x128xf32>
    %cst_29 = arith.constant dense<0.000000e+00> : vector<8x128xf32>
    %30 = tpu.matmul %27, %28, %cst_29 {dimension_numbers = #tpu.dot_dimension_numbers<[1], [0], [0], [1], [0, 0, 1, 1], [], []>} : vector<8x128xf32>, vector<128x128xf32>, vector<8x128xf32> -> vector<8x128xf32>
    %31 = vector.broadcast %29 : vector<1x128xf32> to vector<8x128xf32>
    %32 = arith.addf %30, %31 : vector<8x128xf32>
    %c0_30 = arith.constant 0 : index
    %c0_31 = arith.constant 0 : index
    %33 = vector.load %arg15[%c0_30, %c0_31] : memref<8x128xf32, #tpu.memory_space<vmem>>, vector<8x128xf32>
    tpu.vector_store %arg15[%c0_30, %c0_31], %32 {strides = array<i32>} : memref<8x128xf32, #tpu.memory_space<vmem>>, vector<8x128xf32>,
    return
  }
  func.func @transform_0(%arg0: i32) -> i32 {
    %c0_i32 = arith.constant 0 : i32
    %c0_i32_0 = arith.constant 0 : i32
    return %c0_i32 : i32
  }
  func.func @transform_1(%arg0: i32) -> (i32, i32) {
    %c0_i32 = arith.constant 0 : i32
    %c0_i32_0 = arith.constant 0 : i32
    return %arg0, %c0_i32 : i32, i32
  }
  func.func @transform_2(%arg0: i32) -> (i32, i32) {
    %c0_i32 = arith.constant 0 : i32
    %c0_i32_0 = arith.constant 0 : i32
    return %arg0, %c0_i32 : i32, i32
  }
  func.func @transform_3(%arg0: i32) -> (i32, i32) {
    %c0_i32 = arith.constant 0 : i32
    %c0_i32_0 = arith.constant 0 : i32
    %c0_i32_1 = arith.constant 0 : i32
    return %c0_i32, %c0_i32_0 : i32, i32
  }
  func.func @transform_4(%arg0: i32) -> (i32, i32) {
    %c0_i32 = arith.constant 0 : i32
    %c0_i32_0 = arith.constant 0 : i32
    %c0_i32_1 = arith.constant 0 : i32
    return %c0_i32, %c0_i32_0 : i32, i32
  }
  func.func @transform_5(%arg0: i32) -> (i32, i32) {
    %c0_i32 = arith.constant 0 : i32
    %c0_i32_0 = arith.constant 0 : i32
    %c0_i32_1 = arith.constant 0 : i32
    return %c0_i32, %c0_i32_0 : i32, i32
  }
  func.func @transform_6(%arg0: i32) -> (i32, i32) {
    %c0_i32 = arith.constant 0 : i32
    %c0_i32_0 = arith.constant 0 : i32
    %c0_i32_1 = arith.constant 0 : i32
    return %c0_i32, %c0_i32_0 : i32, i32
  }
  func.func @transform_7(%arg0: i32) -> (i32, i32) {
    %c0_i32 = arith.constant 0 : i32
    %c0_i32_0 = arith.constant 0 : i32
    %c0_i32_1 = arith.constant 0 : i32
    return %c0_i32, %c0_i32_0 : i32, i32
  }
  func.func @transform_8(%arg0: i32) -> (i32, i32) {
    %c0_i32 = arith.constant 0 : i32
    %c0_i32_0 = arith.constant 0 : i32
    %c0_i32_1 = arith.constant 0 : i32
    return %c0_i32, %c0_i32_0 : i32, i32
  }
  func.func @transform_9(%arg0: i32) -> (i32, i32) {
    %c0_i32 = arith.constant 0 : i32
    %c0_i32_0 = arith.constant 0 : i32
    %c0_i32_1 = arith.constant 0 : i32
    return %c0_i32, %c0_i32_0 : i32, i32
  }
  func.func @transform_10(%arg0: i32) -> (i32, i32) {
    %c0_i32 = arith.constant 0 : i32
    %c0_i32_0 = arith.constant 0 : i32
    %c0_i32_1 = arith.constant 0 : i32
    return %c0_i32, %c0_i32_0 : i32, i32
  }
  func.func @transform_11(%arg0: i32) -> (i32, i32) {
    %c0_i32 = arith.constant 0 : i32
    %c0_i32_0 = arith.constant 0 : i32
    %c0_i32_1 = arith.constant 0 : i32
    return %c0_i32, %c0_i32_0 : i32, i32
  }
  func.func @transform_12(%arg0: i32) -> (i32, i32) {
    %c0_i32 = arith.constant 0 : i32
    %c0_i32_0 = arith.constant 0 : i32
    %c0_i32_1 = arith.constant 0 : i32
    return %c0_i32, %c0_i32_0 : i32, i32
  }
  func.func @transform_13(%arg0: i32) -> (i32, i32) {
    %c0_i32 = arith.constant 0 : i32
    %c0_i32_0 = arith.constant 0 : i32
    %c0_i32_1 = arith.constant 0 : i32
    return %c0_i32, %c0_i32_0 : i32, i32
  }
  func.func @transform_14(%arg0: i32) -> (i32, i32) {
    %c0_i32 = arith.constant 0 : i32
    %c0_i32_0 = arith.constant 0 : i32
    return %arg0, %c0_i32 : i32, i32
  }
}

</mosaic_0001>

<llo_original>
// kernel: tpu_custom_call.1
$region0: #{tpu_custom_call.1}
  #allocation0 [shape = 'u32[]', space=smem, size = 0x4, offset = 0x4, fixed_abs, tag = 'smem constant byte address 0x4 - core index']
  #allocation1 [shape = 'u32[144,128]{1,0:T(1,128)}', space=vmem, size = 0x12000, scoped, tag = 'internal scratch']
  #allocation2 [shape = 's32[1]{0:T(128)S(6)}', space=smem, size = 0x200, scoped, tag = 'scoped memory for tpu_custom_call.1']
  %s0 = inlined_call_operand.<no memory space> [shape: s32[1], index: 0, kind: input, shape index: {}]
  %s1 = inlined_call_operand.hbm [shape: f32[24,128], index: 1, kind: input, shape index: {}]
  %s2 = inlined_call_operand.hbm [shape: f32[24,128], index: 2, kind: input, shape index: {}]
  %s3 = inlined_call_operand.hbm [shape: f32[128,128], index: 3, kind: input, shape index: {}]
  %s4 = inlined_call_operand.vmem [shape: f32[1,128], index: 4, kind: input, shape index: {}]
  %s5 = inlined_call_operand.hbm [shape: f32[128,128], index: 5, kind: input, shape index: {}]
  %s6 = inlined_call_operand.hbm [shape: f32[128,128], index: 6, kind: input, shape index: {}]
  %s7 = inlined_call_operand.vmem [shape: f32[1,128], index: 7, kind: input, shape index: {}]
  %s8 = inlined_call_operand.hbm [shape: f32[128,128], index: 8, kind: input, shape index: {}]
  %s9 = inlined_call_operand.vmem [shape: f32[1,128], index: 9, kind: input, shape index: {}]
  %s10 = inlined_call_operand.hbm [shape: f32[128,128], index: 10, kind: input, shape index: {}]
  %s11 = inlined_call_operand.vmem [shape: f32[1,128], index: 11, kind: input, shape index: {}]
  %s12 = inlined_call_operand.hbm [shape: f32[128,128], index: 12, kind: input, shape index: {}]
  %s13 = inlined_call_operand.vmem [shape: f32[1,128], index: 13, kind: input, shape index: {}]
  %s14 = inlined_call_operand.hbm [shape: f32[24,128], index: 14, kind: output, shape index: {}]
  %s15 = sld [smem:[#allocation0]]
  $region121: #{tpu_custom_call.1} parent=0
    _
  %s17 = ssub.s32 1, %s15
  %s18 = scalar_select 0, %s17, %s15
  %19 = sst [smem:[#allocation2]] %s0
  $region1: #{tpu_custom_call.1} parent=0
    #allocation3 [shape = 'u8[8192]{0}', space=vmem, size = 0x2000, scoped, tag = 'input window, operand 1']
    #allocation4 [shape = 's32[2]{0}', space=sflag, size = 0x8, scoped, tag = 'scoped memory for tpu_custom_call.1']
    #allocation5 [shape = 's32[2]{0}', space=sflag, size = 0x8, scoped, tag = 'scoped memory for tpu_custom_call.1']
    #allocation6 [shape = 'u8[8192]{0}', space=vmem, size = 0x2000, scoped, tag = 'input window, operand 2']
    #allocation7 [shape = 's32[2]{0}', space=sflag, size = 0x8, scoped, tag = 'scoped memory for tpu_custom_call.1']
    #allocation8 [shape = 'u8[65536]{0}', space=vmem, size = 0x10000, scoped, tag = 'input window, operand 3, single buffered']
    #allocation9 [shape = 'u8[65536]{0}', space=vmem, size = 0x10000, scoped, tag = 'input window, operand 5, single buffered']
    #allocation10 [shape = 's32[1]{0}', space=sflag, size = 0x4, scoped, tag = 'scoped memory for tpu_custom_call.1']
    #allocation11 [shape = 'u8[65536]{0}', space=vmem, size = 0x10000, scoped, tag = 'input window, operand 6, single buffered']
    #allocation12 [shape = 'u8[65536]{0}', space=vmem, size = 0x10000, scoped, tag = 'input window, operand 8, single buffered']
    #allocation13 [shape = 's32[1]{0}', space=sflag, size = 0x4, scoped, tag = 'scoped memory for tpu_custom_call.1']
    #allocation14 [shape = 'u8[65536]{0}', space=vmem, size = 0x10000, scoped, tag = 'input window, operand 10, single buffered']
    #allocation15 [shape = 'u8[65536]{0}', space=vmem, size = 0x10000, scoped, tag = 'input window, operand 12, single buffered']
    #allocation16 [shape = 's32[1]{0}', space=sflag, size = 0x4, scoped, tag = 'scoped memory for tpu_custom_call.1']
    #allocation17 [shape = 'u8[8192]{0}', space=vmem, size = 0x2000, scoped, tag = 'output window, operand 0']
    %20 = vsyncpa [#allocation4], 0
    %s21 = scalar_lea.sflag [#allocation4], 1
    %22 = vsyncpa %s21, 0
    %23 = vsyncpa [#allocation7], 0
    %s24 = scalar_lea.sflag [#allocation7], 1
    %25 = vsyncpa %s24, 0
    %26 = vsyncpa [#allocation10], 0
    %27 = vsyncpa [#allocation13], 0
    %28 = vsyncpa [#allocation16], 0
    %29 = vsyncpa [#allocation5], 0
    %s30 = scalar_lea.sflag [#allocation5], 1
    %31 = vsyncpa %s30, 0
    loop: start=0, step=1, limit=5
    $region2: #{tpu_custom_call.1} parent=1 // loop_pre_header
      _
    $region3: #{tpu_custom_call.1} parent=1 // loop_header
      %s33 = sphi 0, %s37
      %p34 = scmp.ge.s32.totalorder %s33, 5
      %s41 = sphi 0, %s41
      %s43 = sphi 0, %s41
      %s44 = sphi 0, %s43
      %s58 = sphi 0, %s44
      %s64 = sphi 0, %s66
      %s67 = sphi 0, %s64
      %s68 = sphi 0, %s67
      %s84 = sphi 0, %s68
      %s90 = sphi 0, %s92
      %s93 = sphi 0, %s90
      %s94 = sphi 0, %s93
      %s110 = sphi 0, %s94
      %s114 = sphi 0, %s114
      %s116 = sphi 0, %s114
      %s117 = sphi 0, %s116
      %s131 = sphi 0, %s117
      %s135 = sphi 0, %s135
      %s137 = sphi 0, %s135
      %s138 = sphi 0, %s137
      %s152 = sphi 0, %s138
      %s156 = sphi 0, %s156
      %s158 = sphi 0, %s156
      %s159 = sphi 0, %s158
      %s173 = sphi 0, %s159
      %s177 = sphi 0, %s177
      %s179 = sphi 0, %s177
      %s180 = sphi 0, %s179
      %s194 = sphi 0, %s180
      %s198 = sphi 0, %s198
      %s200 = sphi 0, %s198
      %s201 = sphi 0, %s200
      %s215 = sphi 0, %s201
      %s219 = sphi 0, %s219
      %s221 = sphi 0, %s219
      %s222 = sphi 0, %s221
      %s236 = sphi 0, %s222
      %s240 = sphi 0, %s240
      %s242 = sphi 0, %s240
      %s243 = sphi 0, %s242
      %s257 = sphi 0, %s243
      %s261 = sphi 0, %s261
      %s263 = sphi 0, %s261
      %s264 = sphi 0, %s263
      %s278 = sphi 0, %s264
      %s282 = sphi 0, %s282
      %s284 = sphi 0, %s282
      %s285 = sphi 0, %s284
      %s299 = sphi 0, %s285
      %s303 = sphi 0, %s303
      %s305 = sphi 0, %s303
      %s306 = sphi 0, %s305
      %s320 = sphi 0, %s306
      %s324 = sphi 0, %s324
      %s326 = sphi 0, %s324
      %s327 = sphi 0, %s326
      %s341 = sphi 0, %s327
      %s347 = sphi 0, %s349
      %s350 = sphi 0, %s347
      %s351 = sphi 0, %s350
      %s367 = sphi 0, %s351
    $region4: #{tpu_custom_call.1} parent=1 // loop_header_branch
      %36 = sbr.rel (%p34) target = $region8
    $region5: #{tpu_custom_call.1} parent=1 // loop_body
      %s38 = ssub.s32 %s33, 1
      %s39 = ssub.s32 %s33, 2
      %s40 = sadd.s32 %s33, 1
      %s42 = sadd.s32 %s41, 1
      %p45 = scmp.eq.s32.totalorder %s33, 2
      %p46 = scmp.ne.s32.totalorder %s41, %s43
      %p47 = scmp.eq.s32.totalorder %s33, 0
      %p48 = por %p46, %p47
      %p49 = scmp.ne.s32.totalorder %s41, %s43
      %p50 = scmp.eq.s32.totalorder %s38, 2
      %p51 = por %p49, %p50
      %p52 = scmp.ne.s32.totalorder %s43, %s44
      %p53 = scmp.eq.s32.totalorder %s38, 0
      %p54 = por %p52, %p53
      %p55 = scmp.ne.s32.totalorder %s43, %s44
      %p56 = scmp.eq.s32.totalorder %s39, 2
      %p57 = por %p55, %p56
      %p59 = scmp.ne.s32.totalorder %s44, %s58
      %p60 = scmp.eq.s32.totalorder %s39, 0
      %p61 = por %p59, %p60
      %s62 = ssub.s32 %s33, %s40
      %p63 = scmp.eq.s32.totalorder %s62, 0
      %s65 = sadd.s32 %s64, 1
      %s66 = scalar_select %p63, %s64, %s65
      %p69 = pneg %p63
      %p70 = scmp.eq.s32.totalorder %s33, 2
      %p71 = por %p69, %p70
      %p72 = scmp.ne.s32.totalorder %s64, %s67
      %p73 = scmp.eq.s32.totalorder %s33, 0
      %p74 = por %p72, %p73
      %p75 = scmp.ne.s32.totalorder %s64, %s67
      %p76 = scmp.eq.s32.totalorder %s38, 2
      %p77 = por %p75, %p76
      %p78 = scmp.ne.s32.totalorder %s67, %s68
      %p79 = scmp.eq.s32.totalorder %s38, 0
      %p80 = por %p78, %p79
      %p81 = scmp.ne.s32.totalorder %s67, %s68
      %p82 = scmp.eq.s32.totalorder %s39, 2
      %p83 = por %p81, %p82
      %p85 = scmp.ne.s32.totalorder %s68, %s84
      %p86 = scmp.eq.s32.totalorder %s39, 0
      %p87 = por %p85, %p86
      %s88 = ssub.s32 %s33, %s40
      %p89 = scmp.eq.s32.totalorder %s88, 0
      %s91 = sadd.s32 %s90, 1
      %s92 = scalar_select %p89, %s90, %s91
      %p95 = pneg %p89
      %p96 = scmp.eq.s32.totalorder %s33, 2
      %p97 = por %p95, %p96
      %p98 = scmp.ne.s32.totalorder %s90, %s93
      %p99 = scmp.eq.s32.totalorder %s33, 0
      %p100 = por %p98, %p99
      %p101 = scmp.ne.s32.totalorder %s90, %s93
      %p102 = scmp.eq.s32.totalorder %s38, 2
      %p103 = por %p101, %p102
      %p104 = scmp.ne.s32.totalorder %s93, %s94
      %p105 = scmp.eq.s32.totalorder %s38, 0
      %p106 = por %p104, %p105
      %p107 = scmp.ne.s32.totalorder %s93, %s94
      %p108 = scmp.eq.s32.totalorder %s39, 2
      %p109 = por %p107, %p108
      %p111 = scmp.ne.s32.totalorder %s94, %s110
      %p112 = scmp.eq.s32.totalorder %s39, 0
      %p113 = por %p111, %p112
      %s115 = sadd.s32 %s114, 1
      %p118 = scmp.eq.s32.totalorder %s33, 2
      %p119 = scmp.ne.s32.totalorder %s114, %s116
      %p120 = scmp.eq.s32.totalorder %s33, 0
      %p121 = por %p119, %p120
      %p122 = scmp.ne.s32.totalorder %s114, %s116
      %p123 = scmp.eq.s32.totalorder %s38, 2
      %p124 = por %p122, %p123
      %p125 = scmp.ne.s32.totalorder %s116, %s117
      %p126 = scmp.eq.s32.totalorder %s38, 0
      %p127 = por %p125, %p126
      %p128 = scmp.ne.s32.totalorder %s116, %s117
      %p129 = scmp.eq.s32.totalorder %s39, 2
      %p130 = por %p128, %p129
      %p132 = scmp.ne.s32.totalorder %s117, %s131
      %p133 = scmp.eq.s32.totalorder %s39, 0
      %p134 = por %p132, %p133
      %s136 = sadd.s32 %s135, 1
      %p139 = scmp.eq.s32.totalorder %s33, 2
      %p140 = scmp.ne.s32.totalorder %s135, %s137
      %p141 = scmp.eq.s32.totalorder %s33, 0
      %p142 = por %p140, %p141
      %p143 = scmp.ne.s32.totalorder %s135, %s137
      %p144 = scmp.eq.s32.totalorder %s38, 2
      %p145 = por %p143, %p144
      %p146 = scmp.ne.s32.totalorder %s137, %s138
      %p147 = scmp.eq.s32.totalorder %s38, 0
      %p148 = por %p146, %p147
      %p149 = scmp.ne.s32.totalorder %s137, %s138
      %p150 = scmp.eq.s32.totalorder %s39, 2
      %p151 = por %p149, %p150
      %p153 = scmp.ne.s32.totalorder %s138, %s152
      %p154 = scmp.eq.s32.totalorder %s39, 0
      %p155 = por %p153, %p154
      %s157 = sadd.s32 %s156, 1
      %p160 = scmp.eq.s32.totalorder %s33, 2
      %p161 = scmp.ne.s32.totalorder %s156, %s158
      %p162 = scmp.eq.s32.totalorder %s33, 0
      %p163 = por %p161, %p162
      %p164 = scmp.ne.s32.totalorder %s156, %s158
      %p165 = scmp.eq.s32.totalorder %s38, 2
      %p166 = por %p164, %p165
      %p167 = scmp.ne.s32.totalorder %s158, %s159
      %p168 = scmp.eq.s32.totalorder %s38, 0
      %p169 = por %p167, %p168
      %p170 = scmp.ne.s32.totalorder %s158, %s159
      %p171 = scmp.eq.s32.totalorder %s39, 2
      %p172 = por %p170, %p171
      %p174 = scmp.ne.s32.totalorder %s159, %s173
      %p175 = scmp.eq.s32.totalorder %s39, 0
      %p176 = por %p174, %p175
      %s178 = sadd.s32 %s177, 1
      %p181 = scmp.eq.s32.totalorder %s33, 2
      %p182 = scmp.ne.s32.totalorder %s177, %s179
      %p183 = scmp.eq.s32.totalorder %s33, 0
      %p184 = por %p182, %p183
      %p185 = scmp.ne.s32.totalorder %s177, %s179
      %p186 = scmp.eq.s32.totalorder %s38, 2
      %p187 = por %p185, %p186
      %p188 = scmp.ne.s32.totalorder %s179, %s180
      %p189 = scmp.eq.s32.totalorder %s38, 0
      %p190 = por %p188, %p189
      %p191 = scmp.ne.s32.totalorder %s179, %s180
      %p192 = scmp.eq.s32.totalorder %s39, 2
      %p193 = por %p191, %p192
      %p195 = scmp.ne.s32.totalorder %s180, %s194
      %p196 = scmp.eq.s32.totalorder %s39, 0
      %p197 = por %p195, %p196
      %s199 = sadd.s32 %s198, 1
      %p202 = scmp.eq.s32.totalorder %s33, 2
      %p203 = scmp.ne.s32.totalorder %s198, %s200
      %p204 = scmp.eq.s32.totalorder %s33, 0
      %p205 = por %p203, %p204
      %p206 = scmp.ne.s32.totalorder %s198, %s200
      %p207 = scmp.eq.s32.totalorder %s38, 2
      %p208 = por %p206, %p207
      %p209 = scmp.ne.s32.totalorder %s200, %s201
      %p210 = scmp.eq.s32.totalorder %s38, 0
      %p211 = por %p209, %p210
      %p212 = scmp.ne.s32.totalorder %s200, %s201
      %p213 = scmp.eq.s32.totalorder %s39, 2
      %p214 = por %p212, %p213
      %p216 = scmp.ne.s32.totalorder %s201, %s215
      %p217 = scmp.eq.s32.totalorder %s39, 0
      %p218 = por %p216, %p217
      %s220 = sadd.s32 %s219, 1
      %p223 = scmp.eq.s32.totalorder %s33, 2
      %p224 = scmp.ne.s32.totalorder %s219, %s221
      %p225 = scmp.eq.s32.totalorder %s33, 0
      %p226 = por %p224, %p225
      %p227 = scmp.ne.s32.totalorder %s219, %s221
      %p228 = scmp.eq.s32.totalorder %s38, 2
      %p229 = por %p227, %p228
      %p230 = scmp.ne.s32.totalorder %s221, %s222
      %p231 = scmp.eq.s32.totalorder %s38, 0
      %p232 = por %p230, %p231
      %p233 = scmp.ne.s32.totalorder %s221, %s222
      %p234 = scmp.eq.s32.totalorder %s39, 2
      %p235 = por %p233, %p234
      %p237 = scmp.ne.s32.totalorder %s222, %s236
      %p238 = scmp.eq.s32.totalorder %s39, 0
      %p239 = por %p237, %p238
      %s241 = sadd.s32 %s240, 1
      %p244 = scmp.eq.s32.totalorder %s33, 2
      %p245 = scmp.ne.s32.totalorder %s240, %s242
      %p246 = scmp.eq.s32.totalorder %s33, 0
      %p247 = por %p245, %p246
      %p248 = scmp.ne.s32.totalorder %s240, %s242
      %p249 = scmp.eq.s32.totalorder %s38, 2
      %p250 = por %p248, %p249
      %p251 = scmp.ne.s32.totalorder %s242, %s243
      %p252 = scmp.eq.s32.totalorder %s38, 0
      %p253 = por %p251, %p252
      %p254 = scmp.ne.s32.totalorder %s242, %s243
      %p255 = scmp.eq.s32.totalorder %s39, 2
      %p256 = por %p254, %p255
      %p258 = scmp.ne.s32.totalorder %s243, %s257
      %p259 = scmp.eq.s32.totalorder %s39, 0
      %p260 = por %p258, %p259
      %s262 = sadd.s32 %s261, 1
      %p265 = scmp.eq.s32.totalorder %s33, 2
      %p266 = scmp.ne.s32.totalorder %s261, %s263
      %p267 = scmp.eq.s32.totalorder %s33, 0
      %p268 = por %p266, %p267
      %p269 = scmp.ne.s32.totalorder %s261, %s263
      %p270 = scmp.eq.s32.totalorder %s38, 2
      %p271 = por %p269, %p270
      %p272 = scmp.ne.s32.totalorder %s263, %s264
      %p273 = scmp.eq.s32.totalorder %s38, 0
      %p274 = por %p272, %p273
      %p275 = scmp.ne.s32.totalorder %s263, %s264
      %p276 = scmp.eq.s32.totalorder %s39, 2
      %p277 = por %p275, %p276
      %p279 = scmp.ne.s32.totalorder %s264, %s278
      %p280 = scmp.eq.s32.totalorder %s39, 0
      %p281 = por %p279, %p280
      %s283 = sadd.s32 %s282, 1
      %p286 = scmp.eq.s32.totalorder %s33, 2
      %p287 = scmp.ne.s32.totalorder %s282, %s284
      %p288 = scmp.eq.s32.totalorder %s33, 0
      %p289 = por %p287, %p288
      %p290 = scmp.ne.s32.totalorder %s282, %s284
      %p291 = scmp.eq.s32.totalorder %s38, 2
      %p292 = por %p290, %p291
      %p293 = scmp.ne.s32.totalorder %s284, %s285
      %p294 = scmp.eq.s32.totalorder %s38, 0
      %p295 = por %p293, %p294
      %p296 = scmp.ne.s32.totalorder %s284, %s285
      %p297 = scmp.eq.s32.totalorder %s39, 2
      %p298 = por %p296, %p297
      %p300 = scmp.ne.s32.totalorder %s285, %s299
      %p301 = scmp.eq.s32.totalorder %s39, 0
      %p302 = por %p300, %p301
      %s304 = sadd.s32 %s303, 1
      %p307 = scmp.eq.s32.totalorder %s33, 2
      %p308 = scmp.ne.s32.totalorder %s303, %s305
      %p309 = scmp.eq.s32.totalorder %s33, 0
      %p310 = por %p308, %p309
      %p311 = scmp.ne.s32.totalorder %s303, %s305
      %p312 = scmp.eq.s32.totalorder %s38, 2
      %p313 = por %p311, %p312
      %p314 = scmp.ne.s32.totalorder %s305, %s306
      %p315 = scmp.eq.s32.totalorder %s38, 0
      %p316 = por %p314, %p315
      %p317 = scmp.ne.s32.totalorder %s305, %s306
      %p318 = scmp.eq.s32.totalorder %s39, 2
      %p319 = por %p317, %p318
      %p321 = scmp.ne.s32.totalorder %s306, %s320
      %p322 = scmp.eq.s32.totalorder %s39, 0
      %p323 = por %p321, %p322
      %s325 = sadd.s32 %s324, 1
      %p328 = scmp.eq.s32.totalorder %s33, 2
      %p329 = scmp.ne.s32.totalorder %s324, %s326
      %p330 = scmp.eq.s32.totalorder %s33, 0
      %p331 = por %p329, %p330
      %p332 = scmp.ne.s32.totalorder %s324, %s326
      %p333 = scmp.eq.s32.totalorder %s38, 2
      %p334 = por %p332, %p333
      %p335 = scmp.ne.s32.totalorder %s326, %s327
      %p336 = scmp.eq.s32.totalorder %s38, 0
      %p337 = por %p335, %p336
      %p338 = scmp.ne.s32.totalorder %s326, %s327
      %p339 = scmp.eq.s32.totalorder %s39, 2
      %p340 = por %p338, %p339
      %p342 = scmp.ne.s32.totalorder %s327, %s341
      %p343 = scmp.eq.s32.totalorder %s39, 0
      %p344 = por %p342, %p343
      %s345 = ssub.s32 %s33, %s40
      %p346 = scmp.eq.s32.totalorder %s345, 0
      %s348 = sadd.s32 %s347, 1
      %s349 = scalar_select %p346, %s347, %s348
      %p352 = pneg %p346
      %p353 = scmp.eq.s32.totalorder %s33, 2
      %p354 = por %p352, %p353
      %p355 = scmp.ne.s32.totalorder %s347, %s350
      %p356 = scmp.eq.s32.totalorder %s33, 0
      %p357 = por %p355, %p356
      %p358 = scmp.ne.s32.totalorder %s347, %s350
      %p359 = scmp.eq.s32.totalorder %s38, 2
      %p360 = por %p358, %p359
      %p361 = scmp.ne.s32.totalorder %s350, %s351
      %p362 = scmp.eq.s32.totalorder %s38, 0
      %p363 = por %p361, %p362
      %p364 = scmp.ne.s32.totalorder %s350, %s351
      %p365 = scmp.eq.s32.totalorder %s39, 2
      %p366 = por %p364, %p365
      %p368 = scmp.ne.s32.totalorder %s351, %s367
      %p369 = scmp.eq.s32.totalorder %s39, 0
      %p370 = por %p368, %p369
      %p371 = scmp.le.s32.totalorder 1, %s33
      %p372 = scmp.lt.s32.totalorder %s33, 4
      %p373 = pnand %p371, %p372
      %p374 = pneg %p373
      // Predicated region
      $region9: #{tpu_custom_call.1} parent=5 // pred_check
        _
      $region10: #{tpu_custom_call.1} parent=5 // pred_check_branch
        %376 = sbr.rel (%p373) target = $region12
      $region11: #{tpu_custom_call.1} parent=5 // pred_region
        %s377 = ssub.s32 %s33, 1
        // Predicated region
        $region13: #{tpu_custom_call.1} parent=11 // pred_check
          %p378 = pneg %p54
        $region14: #{tpu_custom_call.1} parent=11 // pred_check_branch
          %380 = sbr.rel (%p378) target = $region16
        $region15: #{tpu_custom_call.1} parent=11 // pred_region
          _
        $region16: #{tpu_custom_call.1} parent=11 // pred_fallthru
          _
        // Predicated region
        $region17: #{tpu_custom_call.1} parent=11 // pred_check
          %p381 = pneg %p127
        $region18: #{tpu_custom_call.1} parent=11 // pred_check_branch
          %383 = sbr.rel (%p381) target = $region20
        $region19: #{tpu_custom_call.1} parent=11 // pred_region
          %s385 = ssub.s32 2048, 2048
          %386 = vsyncadd [#allocation7], %s385
          %s387 = sshll.u32 [#allocation8], 4
          %s388 = int_to_ptr.vmem [resolvable:$true] %s387
          %393 = dma.hbm_to_vmem [thread:$0]  %s3, 2048, %s388, [#allocation7], 128, 128, 8
        $region20: #{tpu_custom_call.1} parent=11 // pred_fallthru
          _
        // Predicated region
        $region21: #{tpu_custom_call.1} parent=11 // pred_check
          %p394 = pneg %p148
        $region22: #{tpu_custom_call.1} parent=11 // pred_check_branch
          %396 = sbr.rel (%p394) target = $region24
        $region23: #{tpu_custom_call.1} parent=11 // pred_region
          _
        $region24: #{tpu_custom_call.1} parent=11 // pred_fallthru
          _
        // Predicated region
        $region25: #{tpu_custom_call.1} parent=11 // pred_check
          %p397 = pneg %p169
        $region26: #{tpu_custom_call.1} parent=11 // pred_check_branch
          %399 = sbr.rel (%p397) target = $region28
        $region27: #{tpu_custom_call.1} parent=11 // pred_region
          %s401 = ssub.s32 2048, 2048
          %402 = vsyncadd [#allocation10], %s401
          %s403 = sshll.u32 [#allocation9], 4
          %s404 = int_to_ptr.vmem [resolvable:$true] %s403
          %409 = dma.hbm_to_vmem [thread:$0]  %s5, 2048, %s404, [#allocation10], 128, 128, 8
        $region28: #{tpu_custom_call.1} parent=11 // pred_fallthru
          _
        // Predicated region
        $region29: #{tpu_custom_call.1} parent=11 // pred_check
          %p410 = pneg %p190
        $region30: #{tpu_custom_call.1} parent=11 // pred_check_branch
          %412 = sbr.rel (%p410) target = $region32
        $region31: #{tpu_custom_call.1} parent=11 // pred_region
          %s414 = ssub.s32 2048, 2048
          %415 = vsyncadd [#allocation10], %s414
          %s416 = sshll.u32 [#allocation11], 4
          %s417 = int_to_ptr.vmem [resolvable:$true] %s416
          %422 = dma.hbm_to_vmem [thread:$0]  %s6, 2048, %s417, [#allocation10], 128, 128, 8
        $region32: #{tpu_custom_call.1} parent=11 // pred_fallthru
          _
        // Predicated region
        $region33: #{tpu_custom_call.1} parent=11 // pred_check
          %p423 = pneg %p211
        $region34: #{tpu_custom_call.1} parent=11 // pred_check_branch
          %425 = sbr.rel (%p423) target = $region36
        $region35: #{tpu_custom_call.1} parent=11 // pred_region
          _
        $region36: #{tpu_custom_call.1} parent=11 // pred_fallthru
          _
        // Predicated region
        $region37: #{tpu_custom_call.1} parent=11 // pred_check
          %p426 = pneg %p232
        $region38: #{tpu_custom_call.1} parent=11 // pred_check_branch
          %428 = sbr.rel (%p426) target = $region40
        $region39: #{tpu_custom_call.1} parent=11 // pred_region
          %s430 = ssub.s32 2048, 2048
          %431 = vsyncadd [#allocation13], %s430
          %s432 = sshll.u32 [#allocation12], 4
          %s433 = int_to_ptr.vmem [resolvable:$true] %s432
          %438 = dma.hbm_to_vmem [thread:$0]  %s8, 2048, %s433, [#allocation13], 128, 128, 8
        $region40: #{tpu_custom_call.1} parent=11 // pred_fallthru
          _
        // Predicated region
        $region41: #{tpu_custom_call.1} parent=11 // pred_check
          %p439 = pneg %p253
        $region42: #{tpu_custom_call.1} parent=11 // pred_check_branch
          %441 = sbr.rel (%p439) target = $region44
        $region43: #{tpu_custom_call.1} parent=11 // pred_region
          _
        $region44: #{tpu_custom_call.1} parent=11 // pred_fallthru
          _
        // Predicated region
        $region45: #{tpu_custom_call.1} parent=11 // pred_check
          %p442 = pneg %p274
        $region46: #{tpu_custom_call.1} parent=11 // pred_check_branch
          %444 = sbr.rel (%p442) target = $region48
        $region47: #{tpu_custom_call.1} parent=11 // pred_region
          %s446 = ssub.s32 2048, 2048
          %447 = vsyncadd [#allocation13], %s446
          %s448 = sshll.u32 [#allocation14], 4
          %s449 = int_to_ptr.vmem [resolvable:$true] %s448
          %454 = dma.hbm_to_vmem [thread:$0]  %s10, 2048, %s449, [#allocation13], 128, 128, 8
        $region48: #{tpu_custom_call.1} parent=11 // pred_fallthru
          _
        // Predicated region
        $region49: #{tpu_custom_call.1} parent=11 // pred_check
          %p455 = pneg %p295
        $region50: #{tpu_custom_call.1} parent=11 // pred_check_branch
          %457 = sbr.rel (%p455) target = $region52
        $region51: #{tpu_custom_call.1} parent=11 // pred_region
          _
        $region52: #{tpu_custom_call.1} parent=11 // pred_fallthru
          _
        // Predicated region
        $region53: #{tpu_custom_call.1} parent=11 // pred_check
          %p458 = pneg %p316
        $region54: #{tpu_custom_call.1} parent=11 // pred_check_branch
          %460 = sbr.rel (%p458) target = $region56
        $region55: #{tpu_custom_call.1} parent=11 // pred_region
          %s462 = ssub.s32 2048, 2048
          %463 = vsyncadd [#allocation16], %s462
          %s464 = sshll.u32 [#allocation15], 4
          %s465 = int_to_ptr.vmem [resolvable:$true] %s464
          %470 = dma.hbm_to_vmem [thread:$0]  %s12, 2048, %s465, [#allocation16], 128, 128, 8
        $region56: #{tpu_custom_call.1} parent=11 // pred_fallthru
          _
        // Predicated region
        $region57: #{tpu_custom_call.1} parent=11 // pred_check
          %p471 = pneg %p337
        $region58: #{tpu_custom_call.1} parent=11 // pred_check_branch
          %473 = sbr.rel (%p471) target = $region60
        $region59: #{tpu_custom_call.1} parent=11 // pred_region
          _
        $region60: #{tpu_custom_call.1} parent=11 // pred_fallthru
          _
      $region12: #{tpu_custom_call.1} parent=5 // pred_fallthru
        _
      %p474 = scmp.lt.s32.totalorder %s33, 3
      // Predicated region
      $region61: #{tpu_custom_call.1} parent=5 // pred_check
        %p475 = pneg %p474
      $region62: #{tpu_custom_call.1} parent=5 // pred_check_branch
        %477 = sbr.rel (%p475) target = $region64
      $region63: #{tpu_custom_call.1} parent=5 // pred_region
        // Predicated region
        $region65: #{tpu_custom_call.1} parent=63 // pred_check
          %p478 = pneg %p74
        $region66: #{tpu_custom_call.1} parent=63 // pred_check_branch
          %480 = sbr.rel (%p478) target = $region68
        $region67: #{tpu_custom_call.1} parent=63 // pred_region
          %s481 = sand.u32 %s64, 1
          %s482 = scalar_lea.sflag [#allocation4], %s481
          %s483 = sand.u32 %s64, 1
          %s484 = smul.addr %s483, 8
          %s485 = scalar_lea.vmem [#allocation3], %s484
          %s487 = ssub.s32 128, 128
          %488 = vsyncadd %s482, %s487
          %s489 = smul.addr %s33, 128
          %s490 = scalar_lea.hbm %s1, %s489
          %s492 = sshll.u32 %s485, 4
          %s493 = int_to_ptr.vmem [resolvable:$true] %s492
          %495 = dma.hbm_to_vmem [thread:$0]  %s490, 128, %s493, %s482
        $region68: #{tpu_custom_call.1} parent=63 // pred_fallthru
          _
        // Predicated region
        $region69: #{tpu_custom_call.1} parent=63 // pred_check
          %p496 = pneg %p100
        $region70: #{tpu_custom_call.1} parent=63 // pred_check_branch
          %498 = sbr.rel (%p496) target = $region72
        $region71: #{tpu_custom_call.1} parent=63 // pred_region
          %s499 = sand.u32 %s33, 1
          %s500 = scalar_lea.sflag [#allocation7], %s499
          %s501 = sand.u32 %s90, 1
          %s502 = smul.addr %s501, 8
          %s503 = scalar_lea.vmem [#allocation6], %s502
          %s505 = ssub.s32 128, 128
          %506 = vsyncadd %s500, %s505
          %s507 = smul.addr %s33, 128
          %s508 = scalar_lea.hbm %s2, %s507
          %s510 = sshll.u32 %s503, 4
          %s511 = int_to_ptr.vmem [resolvable:$true] %s510
          %513 = dma.hbm_to_vmem [thread:$0]  %s508, 128, %s511, %s500
        $region72: #{tpu_custom_call.1} parent=63 // pred_fallthru
          _
      $region64: #{tpu_custom_call.1} parent=5 // pred_fallthru
        _
      %p514 = scmp.le.s32.totalorder 1, %s33
      %p515 = scmp.lt.s32.totalorder %s33, 4
      %p516 = pnand %p514, %p515
      %p517 = pneg %p516
      // Predicated region
      $region73: #{tpu_custom_call.1} parent=5 // pred_check
        _
      $region74: #{tpu_custom_call.1} parent=5 // pred_check_branch
        %519 = sbr.rel (%p516) target = $region76
      $region75: #{tpu_custom_call.1} parent=5 // pred_region
        %s520 = ssub.s32 %s33, 1
        %s521 = sand.u32 %s67, 1
        %s522 = scalar_lea.sflag [#allocation4], %s521
        %s523 = sand.u32 %s67, 1
        %s524 = smul.addr %s523, 8
        %s525 = scalar_lea.vmem [#allocation3], %s524
        // Predicated region
        $region77: #{tpu_custom_call.1} parent=75 // pred_check
          %p526 = pneg %p80
        $region78: #{tpu_custom_call.1} parent=75 // pred_check_branch
          %528 = sbr.rel (%p526) target = $region80
        $region79: #{tpu_custom_call.1} parent=75 // pred_region
          %529 = dma.done %s522, 128
        $region80: #{tpu_custom_call.1} parent=75 // pred_fallthru
          _
        %s530 = sand.u32 %s38, 1
        %s531 = scalar_lea.sflag [#allocation7], %s530
        %s532 = sand.u32 %s93, 1
        %s533 = smul.addr %s532, 8
        %s534 = scalar_lea.vmem [#allocation6], %s533
        // Predicated region
        $region81: #{tpu_custom_call.1} parent=75 // pred_check
          %p535 = pneg %p106
        $region82: #{tpu_custom_call.1} parent=75 // pred_check_branch
          %537 = sbr.rel (%p535) target = $region84
        $region83: #{tpu_custom_call.1} parent=75 // pred_region
          %538 = dma.done %s531, 128
        $region84: #{tpu_custom_call.1} parent=75 // pred_fallthru
          _
        // Predicated region
        $region85: #{tpu_custom_call.1} parent=75 // pred_check
          %p539 = pneg %p127
        $region86: #{tpu_custom_call.1} parent=75 // pred_check_branch
          %541 = sbr.rel (%p539) target = $region88
        $region87: #{tpu_custom_call.1} parent=75 // pred_region
          %542 = dma.done [#allocation7], 2048
        $region88: #{tpu_custom_call.1} parent=75 // pred_fallthru
          _
        // Predicated region
        $region89: #{tpu_custom_call.1} parent=75 // pred_check
          %p543 = pneg %p169
        $region90: #{tpu_custom_call.1} parent=75 // pred_check_branch
          %545 = sbr.rel (%p543) target = $region92
        $region91: #{tpu_custom_call.1} parent=75 // pred_region
          %546 = dma.done [#allocation10], 2048
        $region92: #{tpu_custom_call.1} parent=75 // pred_fallthru
          _
        // Predicated region
        $region93: #{tpu_custom_call.1} parent=75 // pred_check
          %p547 = pneg %p190
        $region94: #{tpu_custom_call.1} parent=75 // pred_check_branch
          %549 = sbr.rel (%p547) target = $region96
        $region95: #{tpu_custom_call.1} parent=75 // pred_region
          %550 = dma.done [#allocation10], 2048
        $region96: #{tpu_custom_call.1} parent=75 // pred_fallthru
          _
        // Predicated region
        $region97: #{tpu_custom_call.1} parent=75 // pred_check
          %p551 = pneg %p232
        $region98: #{tpu_custom_call.1} parent=75 // pred_check_branch
          %553 = sbr.rel (%p551) target = $region100
        $region99: #{tpu_custom_call.1} parent=75 // pred_region
          %554 = dma.done [#allocation13], 2048
        $region100: #{tpu_custom_call.1} parent=75 // pred_fallthru
          _
        // Predicated region
        $region101: #{tpu_custom_call.1} parent=75 // pred_check
          %p555 = pneg %p274
        $region102: #{tpu_custom_call.1} parent=75 // pred_check_branch
          %557 = sbr.rel (%p555) target = $region104
        $region103: #{tpu_custom_call.1} parent=75 // pred_region
          %558 = dma.done [#allocation13], 2048
        $region104: #{tpu_custom_call.1} parent=75 // pred_fallthru
          _
        // Predicated region
        $region105: #{tpu_custom_call.1} parent=75 // pred_check
          %p559 = pneg %p316
        $region106: #{tpu_custom_call.1} parent=75 // pred_check_branch
          %561 = sbr.rel (%p559) target = $region108
        $region107: #{tpu_custom_call.1} parent=75 // pred_region
          %562 = dma.done [#allocation16], 2048
        $region108: #{tpu_custom_call.1} parent=75 // pred_fallthru
          _
        %p563 = pneg %p54
        %p564 = pneg %p51
        %s565 = sand.u32 %s67, 1
        %s566 = scalar_lea.sflag [#allocation4], %s565
        %s567 = sand.u32 %s67, 1
        %s568 = smul.addr %s567, 8
        %s569 = scalar_lea.vmem [#allocation3], %s568
        %p570 = pneg %p80
        %p571 = pneg %p77
        %s572 = sand.u32 %s38, 1
        %s573 = scalar_lea.sflag [#allocation7], %s572
        %s574 = sand.u32 %s93, 1
        %s575 = smul.addr %s574, 8
        %s576 = scalar_lea.vmem [#allocation6], %s575
        %p577 = pneg %p106
        %p578 = pneg %p103
        %p579 = pneg %p127
        %p580 = pneg %p124
        %p581 = pneg %p148
        %p582 = pneg %p145
        %p583 = pneg %p169
        %p584 = pneg %p166
        %p585 = pneg %p190
        %p586 = pneg %p187
        %p587 = pneg %p211
        %p588 = pneg %p208
        %p589 = pneg %p232
        %p590 = pneg %p229
        %p591 = pneg %p253
        %p592 = pneg %p250
        %p593 = pneg %p274
        %p594 = pneg %p271
        %p595 = pneg %p295
        %p596 = pneg %p292
        %p597 = pneg %p316
        %p598 = pneg %p313
        %p599 = pneg %p337
        %p600 = pneg %p334
        %p601 = pneg %p363
        %p602 = pneg %p360
        %s603 = sand.u32 %s350, 1
        %s604 = scalar_lea.sflag [#allocation5], %s603
        %s605 = sand.u32 %s350, 1
        %s606 = smul.addr %s605, 8
        %s607 = scalar_lea.vmem [#allocation17], %s606
        %v608 = vld [vmem:[%s534] sm:$0xff]
        %v609 = vld [vmem:[#allocation8] sm:$0xff]
        %v610 = vld [vmem:[#allocation8 + $0x8] sm:$0xff]
        %v611 = vld [vmem:[#allocation8 + $0x10] sm:$0xff]
        %v612 = vld [vmem:[#allocation8 + $0x18] sm:$0xff]
        %v613 = vld [vmem:[#allocation8 + $0x20] sm:$0xff]
        %v614 = vld [vmem:[#allocation8 + $0x28] sm:$0xff]
        %v615 = vld [vmem:[#allocation8 + $0x30] sm:$0xff]
        %v616 = vld [vmem:[#allocation8 + $0x38] sm:$0xff]
        %v617 = vld [vmem:[#allocation8 + $0x40] sm:$0xff]
        %v618 = vld [vmem:[#allocation8 + $0x48] sm:$0xff]
        %v619 = vld [vmem:[#allocation8 + $0x50] sm:$0xff]
        %v620 = vld [vmem:[#allocation8 + $0x58] sm:$0xff]
        %v621 = vld [vmem:[#allocation8 + $0x60] sm:$0xff]
        %v622 = vld [vmem:[#allocation8 + $0x68] sm:$0xff]
        %v623 = vld [vmem:[#allocation8 + $0x70] sm:$0xff]
        %v624 = vld [vmem:[#allocation8 + $0x78] sm:$0xff]
        %v625 = vld [vmem:[%s4] sm:$0x1]
        %v627 = vlaneseq
        %v628 = vshrl.u32 %v627, 7
        %v629 = vsub.s32 0, %v628
        %v630 = vrot.slane %v625, %v629
        %632 = vmatprep.subr.mxu0 0.0
        %633 = vmatpush1.msra.mxu0 %v609
        %634 = vmatprep.subr.mxu0 0.0
        %635 = vmatpush1.msra.mxu0 %v610
        %636 = vmatprep.subr.mxu0 0.0
        %637 = vmatpush1.msra.mxu0 %v611
        %638 = vmatprep.subr.mxu0 0.0
        %639 = vmatpush1.msra.mxu0 %v612
        %640 = vmatprep.subr.mxu0 0.0
        %641 = vmatpush1.msra.mxu0 %v613
        %642 = vmatprep.subr.mxu0 0.0
        %643 = vmatpush1.msra.mxu0 %v614
        %644 = vmatprep.subr.mxu0 0.0
        %645 = vmatpush1.msra.mxu0 %v615
        %646 = vmatprep.subr.mxu0 0.0
        %647 = vmatpush1.msra.mxu0 %v616
        %648 = vmatprep.subr.mxu0 0.0
        %649 = vmatpush1.msra.mxu0 %v617
        %650 = vmatprep.subr.mxu0 0.0
        %651 = vmatpush1.msra.mxu0 %v618
        %652 = vmatprep.subr.mxu0 0.0
        %653 = vmatpush1.msra.mxu0 %v619
        %654 = vmatprep.subr.mxu0 0.0
        %655 = vmatpush1.msra.mxu0 %v620
        %656 = vmatprep.subr.mxu0 0.0
        %657 = vmatpush1.msra.mxu0 %v621
        %658 = vmatprep.subr.mxu0 0.0
        %659 = vmatpush1.msra.mxu0 %v622
        %660 = vmatprep.subr.mxu0 0.0
        %661 = vmatpush1.msra.mxu0 %v623
        %662 = vmatprep.subr.mxu0 0.0
        %663 = vmatpush1.msra.mxu0 %v624
        %664 = vmatprep.subr.mxu0 0.0
        %665 = vmatpush1.msra.mxu0 0.0
        %666 = vmatprep.subr.mxu0 0.0
        %667 = vmatpush1.msra.mxu0 0.0
        %668 = vmatprep.subr.mxu0 0.0
        %669 = vmatpush1.msra.mxu0 0.0
        %670 = vmatprep.subr.mxu0 0.0
        %671 = vmatpush1.msra.mxu0 0.0
        %672 = vmatprep.subr.mxu0 0.0
        %673 = vmatpush1.msra.mxu0 0.0
        %674 = vmatprep.subr.mxu0 0.0
        %675 = vmatpush1.msra.mxu0 0.0
        %676 = vmatprep.subr.mxu0 0.0
        %677 = vmatpush1.msra.mxu0 0.0
        %678 = vmatprep.subr.mxu0 0.0
        %679 = vmatpush1.msra.mxu0 0.0
        %680 = vmatprep.subr.mxu0 0.0
        %681 = vmatpush1.msra.mxu0 0.0
        %682 = vmatprep.subr.mxu0 0.0
        %683 = vmatpush1.msra.mxu0 0.0
        %684 = vmatprep.subr.mxu0 0.0
        %685 = vmatpush1.msra.mxu0 0.0
        %686 = vmatprep.subr.mxu0 0.0
        %687 = vmatpush1.msra.mxu0 0.0
        %688 = vmatprep.subr.mxu0 0.0
        %689 = vmatpush1.msra.mxu0 0.0
        %690 = vmatprep.subr.mxu0 0.0
        %691 = vmatpush1.msra.mxu0 0.0
        %692 = vmatprep.subr.mxu0 0.0
        %693 = vmatpush1.msra.mxu0 0.0
        %694 = vmatprep.subr.mxu0 0.0
        %695 = vmatpush1.msra.mxu0 0.0
        %696 = vmatprep.mubr.f32.mxu0 0.0
        %697 = vmatmul.mubr.f32.gmra.mrb[0].mxu0 %v608
        %v698 = vpop.f32.mrb[0].mxu0
        %v699 = vadd.f32 %v630, %v698
        %v700 = vpop.f32.mrb[0].mxu0
        %701 = vdwg.mxu0
        %v702 = vld [vmem:[%s525] sm:$0xff]
        %v703 = vld [vmem:[#allocation9] sm:$0xff]
        %v704 = vld [vmem:[#allocation9 + $0x8] sm:$0xff]
        %v705 = vld [vmem:[#allocation9 + $0x10] sm:$0xff]
        %v706 = vld [vmem:[#allocation9 + $0x18] sm:$0xff]
        %v707 = vld [vmem:[#allocation9 + $0x20] sm:$0xff]
        %v708 = vld [vmem:[#allocation9 + $0x28] sm:$0xff]
        %v709 = vld [vmem:[#allocation9 + $0x30] sm:$0xff]
        %v710 = vld [vmem:[#allocation9 + $0x38] sm:$0xff]
        %v711 = vld [vmem:[#allocation9 + $0x40] sm:$0xff]
        %v712 = vld [vmem:[#allocation9 + $0x48] sm:$0xff]
        %v713 = vld [vmem:[#allocation9 + $0x50] sm:$0xff]
        %v714 = vld [vmem:[#allocation9 + $0x58] sm:$0xff]
        %v715 = vld [vmem:[#allocation9 + $0x60] sm:$0xff]
        %v716 = vld [vmem:[#allocation9 + $0x68] sm:$0xff]
        %v717 = vld [vmem:[#allocation9 + $0x70] sm:$0xff]
        %v718 = vld [vmem:[#allocation9 + $0x78] sm:$0xff]
        %v719 = vld [vmem:[#allocation11] sm:$0xff]
        %v720 = vld [vmem:[#allocation11 + $0x8] sm:$0xff]
        %v721 = vld [vmem:[#allocation11 + $0x10] sm:$0xff]
        %v722 = vld [vmem:[#allocation11 + $0x18] sm:$0xff]
        %v723 = vld [vmem:[#allocation11 + $0x20] sm:$0xff]
        %v724 = vld [vmem:[#allocation11 + $0x28] sm:$0xff]
        %v725 = vld [vmem:[#allocation11 + $0x30] sm:$0xff]
        %v726 = vld [vmem:[#allocation11 + $0x38] sm:$0xff]
        %v727 = vld [vmem:[#allocation11 + $0x40] sm:$0xff]
        %v728 = vld [vmem:[#allocation11 + $0x48] sm:$0xff]
        %v729 = vld [vmem:[#allocation11 + $0x50] sm:$0xff]
        %v730 = vld [vmem:[#allocation11 + $0x58] sm:$0xff]
        %v731 = vld [vmem:[#allocation11 + $0x60] sm:$0xff]
        %v732 = vld [vmem:[#allocation11 + $0x68] sm:$0xff]
        %v733 = vld [vmem:[#allocation11 + $0x70] sm:$0xff]
        %v734 = vld [vmem:[#allocation11 + $0x78] sm:$0xff]
        %v735 = vld [vmem:[%s7] sm:$0x1]
        %736 = vmatprep.subr.mxu0 0.0
        %737 = vmatpush1.msra.mxu0 %v719
        %738 = vmatprep.subr.mxu0 0.0
        %739 = vmatpush1.msra.mxu0 %v720
        %740 = vmatprep.subr.mxu0 0.0
        %741 = vmatpush1.msra.mxu0 %v721
        %742 = vmatprep.subr.mxu0 0.0
        %743 = vmatpush1.msra.mxu0 %v722
        %744 = vmatprep.subr.mxu0 0.0
        %745 = vmatpush1.msra.mxu0 %v723
        %746 = vmatprep.subr.mxu0 0.0
        %747 = vmatpush1.msra.mxu0 %v724
        %748 = vmatprep.subr.mxu0 0.0
        %749 = vmatpush1.msra.mxu0 %v725
        %750 = vmatprep.subr.mxu0 0.0
        %751 = vmatpush1.msra.mxu0 %v726
        %752 = vmatprep.subr.mxu0 0.0
        %753 = vmatpush1.msra.mxu0 %v727
        %754 = vmatprep.subr.mxu0 0.0
        %755 = vmatpush1.msra.mxu0 %v728
        %756 = vmatprep.subr.mxu0 0.0
        %757 = vmatpush1.msra.mxu0 %v729
        %758 = vmatprep.subr.mxu0 0.0
        %759 = vmatpush1.msra.mxu0 %v730
        %760 = vmatprep.subr.mxu0 0.0
        %761 = vmatpush1.msra.mxu0 %v731
        %762 = vmatprep.subr.mxu0 0.0
        %763 = vmatpush1.msra.mxu0 %v732
        %764 = vmatprep.subr.mxu0 0.0
        %765 = vmatpush1.msra.mxu0 %v733
        %766 = vmatprep.subr.mxu0 0.0
        %767 = vmatpush1.msra.mxu0 %v734
        %768 = vmatprep.subr.mxu0 0.0
        %769 = vmatpush1.msra.mxu0 0.0
        %770 = vmatprep.subr.mxu0 0.0
        %771 = vmatpush1.msra.mxu0 0.0
        %772 = vmatprep.subr.mxu0 0.0
        %773 = vmatpush1.msra.mxu0 0.0
        %774 = vmatprep.subr.mxu0 0.0
        %775 = vmatpush1.msra.mxu0 0.0
        %776 = vmatprep.subr.mxu0 0.0
        %777 = vmatpush1.msra.mxu0 0.0
        %778 = vmatprep.subr.mxu0 0.0
        %779 = vmatpush1.msra.mxu0 0.0
        %780 = vmatprep.subr.mxu0 0.0
        %781 = vmatpush1.msra.mxu0 0.0
        %782 = vmatprep.subr.mxu0 0.0
        %783 = vmatpush1.msra.mxu0 0.0
        %784 = vmatprep.subr.mxu0 0.0
        %785 = vmatpush1.msra.mxu0 0.0
        %786 = vmatprep.subr.mxu0 0.0
        %787 = vmatpush1.msra.mxu0 0.0
        %788 = vmatprep.subr.mxu0 0.0
        %789 = vmatpush1.msra.mxu0 0.0
        %790 = vmatprep.subr.mxu0 0.0
        %791 = vmatpush1.msra.mxu0 0.0
        %792 = vmatprep.subr.mxu0 0.0
        %793 = vmatpush1.msra.mxu0 0.0
        %794 = vmatprep.subr.mxu0 0.0
        %795 = vmatpush1.msra.mxu0 0.0
        %796 = vmatprep.subr.mxu0 0.0
        %797 = vmatpush1.msra.mxu0 0.0
        %798 = vmatprep.subr.mxu0 0.0
        %799 = vmatpush1.msra.mxu0 0.0
        %800 = vmatprep.mubr.f32.mxu0 0.0
        %801 = vmatmul.mubr.f32.gmra.mrb[0].mxu0 %v699
        %v802 = vpop.f32.mrb[0].mxu0
        %v803 = vadd.f32 0.0, %v802
        %v804 = vpop.f32.mrb[0].mxu0
        %805 = vdwg.mxu0
        %806 = vmatprep.subr.mxu0 0.0
        %807 = vmatpush1.msra.mxu0 %v703
        %808 = vmatprep.subr.mxu0 0.0
        %809 = vmatpush1.msra.mxu0 %v704
        %810 = vmatprep.subr.mxu0 0.0
        %811 = vmatpush1.msra.mxu0 %v705
        %812 = vmatprep.subr.mxu0 0.0
        %813 = vmatpush1.msra.mxu0 %v706
        %814 = vmatprep.subr.mxu0 0.0
        %815 = vmatpush1.msra.mxu0 %v707
        %816 = vmatprep.subr.mxu0 0.0
        %817 = vmatpush1.msra.mxu0 %v708
        %818 = vmatprep.subr.mxu0 0.0
        %819 = vmatpush1.msra.mxu0 %v709
        %820 = vmatprep.subr.mxu0 0.0
        %821 = vmatpush1.msra.mxu0 %v710
        %822 = vmatprep.subr.mxu0 0.0
        %823 = vmatpush1.msra.mxu0 %v711
        %824 = vmatprep.subr.mxu0 0.0
        %825 = vmatpush1.msra.mxu0 %v712
        %826 = vmatprep.subr.mxu0 0.0
        %827 = vmatpush1.msra.mxu0 %v713
        %828 = vmatprep.subr.mxu0 0.0
        %829 = vmatpush1.msra.mxu0 %v714
        %830 = vmatprep.subr.mxu0 0.0
        %831 = vmatpush1.msra.mxu0 %v715
        %832 = vmatprep.subr.mxu0 0.0
        %833 = vmatpush1.msra.mxu0 %v716
        %834 = vmatprep.subr.mxu0 0.0
        %835 = vmatpush1.msra.mxu0 %v717
        %836 = vmatprep.subr.mxu0 0.0
        %837 = vmatpush1.msra.mxu0 %v718
        %838 = vmatprep.subr.mxu0 0.0
        %839 = vmatpush1.msra.mxu0 0.0
        %840 = vmatprep.subr.mxu0 0.0
        %841 = vmatpush1.msra.mxu0 0.0
        %842 = vmatprep.subr.mxu0 0.0
        %843 = vmatpush1.msra.mxu0 0.0
        %844 = vmatprep.subr.mxu0 0.0
        %845 = vmatpush1.msra.mxu0 0.0
        %846 = vmatprep.subr.mxu0 0.0
        %847 = vmatpush1.msra.mxu0 0.0
        %848 = vmatprep.subr.mxu0 0.0
        %849 = vmatpush1.msra.mxu0 0.0
        %850 = vmatprep.subr.mxu0 0.0
        %851 = vmatpush1.msra.mxu0 0.0
        %852 = vmatprep.subr.mxu0 0.0
        %853 = vmatpush1.msra.mxu0 0.0
        %854 = vmatprep.subr.mxu0 0.0
        %855 = vmatpush1.msra.mxu0 0.0
        %856 = vmatprep.subr.mxu0 0.0
        %857 = vmatpush1.msra.mxu0 0.0
        %858 = vmatprep.subr.mxu0 0.0
        %859 = vmatpush1.msra.mxu0 0.0
        %860 = vmatprep.subr.mxu0 0.0
        %861 = vmatpush1.msra.mxu0 0.0
        %862 = vmatprep.subr.mxu0 0.0
        %863 = vmatpush1.msra.mxu0 0.0
        %864 = vmatprep.subr.mxu0 0.0
        %865 = vmatpush1.msra.mxu0 0.0
        %866 = vmatprep.subr.mxu0 0.0
        %867 = vmatpush1.msra.mxu0 0.0
        %868 = vmatprep.subr.mxu0 0.0
        %869 = vmatpush1.msra.mxu0 0.0
        %870 = vmatprep.mubr.f32.mxu0 0.0
        %871 = vmatmul.mubr.f32.gmra.mrb[0].mxu0 %v702
        %v872 = vpop.f32.mrb[0].mxu0
        %v873 = vadd.f32 %v803, %v872
        %v874 = vpop.f32.mrb[0].mxu0
        %875 = vdwg.mxu0
        %v877 = vlaneseq
        %v878 = vshrl.u32 %v877, 7
        %v879 = vsub.s32 0, %v878
        %v880 = vrot.slane %v735, %v879
        %v882 = vadd.f32 %v873, %v880
        %v883 = vtanh.pop %v882
        %v884 = vld [vmem:[#allocation12] sm:$0xff]
        %v885 = vld [vmem:[#allocation12 + $0x8] sm:$0xff]
        %v886 = vld [vmem:[#allocation12 + $0x10] sm:$0xff]
        %v887 = vld [vmem:[#allocation12 + $0x18] sm:$0xff]
        %v888 = vld [vmem:[#allocation12 + $0x20] sm:$0xff]
        %v889 = vld [vmem:[#allocation12 + $0x28] sm:$0xff]
        %v890 = vld [vmem:[#allocation12 + $0x30] sm:$0xff]
        %v891 = vld [vmem:[#allocation12 + $0x38] sm:$0xff]
        %v892 = vld [vmem:[#allocation12 + $0x40] sm:$0xff]
        %v893 = vld [vmem:[#allocation12 + $0x48] sm:$0xff]
        %v894 = vld [vmem:[#allocation12 + $0x50] sm:$0xff]
        %v895 = vld [vmem:[#allocation12 + $0x58] sm:$0xff]
        %v896 = vld [vmem:[#allocation12 + $0x60] sm:$0xff]
        %v897 = vld [vmem:[#allocation12 + $0x68] sm:$0xff]
        %v898 = vld [vmem:[#allocation12 + $0x70] sm:$0xff]
        %v899 = vld [vmem:[#allocation12 + $0x78] sm:$0xff]
        %v900 = vld [vmem:[%s9] sm:$0x1]
        %v902 = vlaneseq
        %v903 = vshrl.u32 %v902, 7
        %v904 = vsub.s32 0, %v903
        %v905 = vrot.slane %v900, %v904
        %907 = vmatprep.subr.mxu0 0.0
        %908 = vmatpush1.msra.mxu0 %v884
        %909 = vmatprep.subr.mxu0 0.0
        %910 = vmatpush1.msra.mxu0 %v885
        %911 = vmatprep.subr.mxu0 0.0
        %912 = vmatpush1.msra.mxu0 %v886
        %913 = vmatprep.subr.mxu0 0.0
        %914 = vmatpush1.msra.mxu0 %v887
        %915 = vmatprep.subr.mxu0 0.0
        %916 = vmatpush1.msra.mxu0 %v888
        %917 = vmatprep.subr.mxu0 0.0
        %918 = vmatpush1.msra.mxu0 %v889
        %919 = vmatprep.subr.mxu0 0.0
        %920 = vmatpush1.msra.mxu0 %v890
        %921 = vmatprep.subr.mxu0 0.0
        %922 = vmatpush1.msra.mxu0 %v891
        %923 = vmatprep.subr.mxu0 0.0
        %924 = vmatpush1.msra.mxu0 %v892
        %925 = vmatprep.subr.mxu0 0.0
        %926 = vmatpush1.msra.mxu0 %v893
        %927 = vmatprep.subr.mxu0 0.0
        %928 = vmatpush1.msra.mxu0 %v894
        %929 = vmatprep.subr.mxu0 0.0
        %930 = vmatpush1.msra.mxu0 %v895
        %931 = vmatprep.subr.mxu0 0.0
        %932 = vmatpush1.msra.mxu0 %v896
        %933 = vmatprep.subr.mxu0 0.0
        %934 = vmatpush1.msra.mxu0 %v897
        %935 = vmatprep.subr.mxu0 0.0
        %936 = vmatpush1.msra.mxu0 %v898
        %937 = vmatprep.subr.mxu0 0.0
        %938 = vmatpush1.msra.mxu0 %v899
        %939 = vmatprep.subr.mxu0 0.0
        %940 = vmatpush1.msra.mxu0 0.0
        %941 = vmatprep.subr.mxu0 0.0
        %942 = vmatpush1.msra.mxu0 0.0
        %943 = vmatprep.subr.mxu0 0.0
        %944 = vmatpush1.msra.mxu0 0.0
        %945 = vmatprep.subr.mxu0 0.0
        %946 = vmatpush1.msra.mxu0 0.0
        %947 = vmatprep.subr.mxu0 0.0
        %948 = vmatpush1.msra.mxu0 0.0
        %949 = vmatprep.subr.mxu0 0.0
        %950 = vmatpush1.msra.mxu0 0.0
        %951 = vmatprep.subr.mxu0 0.0
        %952 = vmatpush1.msra.mxu0 0.0
        %953 = vmatprep.subr.mxu0 0.0
        %954 = vmatpush1.msra.mxu0 0.0
        %955 = vmatprep.subr.mxu0 0.0
        %956 = vmatpush1.msra.mxu0 0.0
        %957 = vmatprep.subr.mxu0 0.0
        %958 = vmatpush1.msra.mxu0 0.0
        %959 = vmatprep.subr.mxu0 0.0
        %960 = vmatpush1.msra.mxu0 0.0
        %961 = vmatprep.subr.mxu0 0.0
        %962 = vmatpush1.msra.mxu0 0.0
        %963 = vmatprep.subr.mxu0 0.0
        %964 = vmatpush1.msra.mxu0 0.0
        %965 = vmatprep.subr.mxu0 0.0
        %966 = vmatpush1.msra.mxu0 0.0
        %967 = vmatprep.subr.mxu0 0.0
        %968 = vmatpush1.msra.mxu0 0.0
        %969 = vmatprep.subr.mxu0 0.0
        %970 = vmatpush1.msra.mxu0 0.0
        %971 = vmatprep.mubr.f32.mxu0 0.0
        %972 = vmatmul.mubr.f32.gmra.mrb[0].mxu0 %v883
        %v973 = vpop.f32.mrb[0].mxu0
        %v974 = vadd.f32 %v905, %v973
        %v975 = vpop.f32.mrb[0].mxu0
        %976 = vdwg.mxu0
        %v977 = vtanh.pop %v974
        %v978 = vld [vmem:[#allocation14] sm:$0xff]
        %v979 = vld [vmem:[#allocation14 + $0x8] sm:$0xff]
        %v980 = vld [vmem:[#allocation14 + $0x10] sm:$0xff]
        %v981 = vld [vmem:[#allocation14 + $0x18] sm:$0xff]
        %v982 = vld [vmem:[#allocation14 + $0x20] sm:$0xff]
        %v983 = vld [vmem:[#allocation14 + $0x28] sm:$0xff]
        %v984 = vld [vmem:[#allocation14 + $0x30] sm:$0xff]
        %v985 = vld [vmem:[#allocation14 + $0x38] sm:$0xff]
        %v986 = vld [vmem:[#allocation14 + $0x40] sm:$0xff]
        %v987 = vld [vmem:[#allocation14 + $0x48] sm:$0xff]
        %v988 = vld [vmem:[#allocation14 + $0x50] sm:$0xff]
        %v989 = vld [vmem:[#allocation14 + $0x58] sm:$0xff]
        %v990 = vld [vmem:[#allocation14 + $0x60] sm:$0xff]
        %v991 = vld [vmem:[#allocation14 + $0x68] sm:$0xff]
        %v992 = vld [vmem:[#allocation14 + $0x70] sm:$0xff]
        %v993 = vld [vmem:[#allocation14 + $0x78] sm:$0xff]
        %v994 = vld [vmem:[%s11] sm:$0x1]
        %v996 = vlaneseq
        %v997 = vshrl.u32 %v996, 7
        %v998 = vsub.s32 0, %v997
        %v999 = vrot.slane %v994, %v998
        %1001 = vmatprep.subr.mxu0 0.0
        %1002 = vmatpush1.msra.mxu0 %v978
        %1003 = vmatprep.subr.mxu0 0.0
        %1004 = vmatpush1.msra.mxu0 %v979
        %1005 = vmatprep.subr.mxu0 0.0
        %1006 = vmatpush1.msra.mxu0 %v980
        %1007 = vmatprep.subr.mxu0 0.0
        %1008 = vmatpush1.msra.mxu0 %v981
        %1009 = vmatprep.subr.mxu0 0.0
        %1010 = vmatpush1.msra.mxu0 %v982
        %1011 = vmatprep.subr.mxu0 0.0
        %1012 = vmatpush1.msra.mxu0 %v983
        %1013 = vmatprep.subr.mxu0 0.0
        %1014 = vmatpush1.msra.mxu0 %v984
        %1015 = vmatprep.subr.mxu0 0.0
        %1016 = vmatpush1.msra.mxu0 %v985
        %1017 = vmatprep.subr.mxu0 0.0
        %1018 = vmatpush1.msra.mxu0 %v986
        %1019 = vmatprep.subr.mxu0 0.0
        %1020 = vmatpush1.msra.mxu0 %v987
        %1021 = vmatprep.subr.mxu0 0.0
        %1022 = vmatpush1.msra.mxu0 %v988
        %1023 = vmatprep.subr.mxu0 0.0
        %1024 = vmatpush1.msra.mxu0 %v989
        %1025 = vmatprep.subr.mxu0 0.0
        %1026 = vmatpush1.msra.mxu0 %v990
        %1027 = vmatprep.subr.mxu0 0.0
        %1028 = vmatpush1.msra.mxu0 %v991
        %1029 = vmatprep.subr.mxu0 0.0
        %1030 = vmatpush1.msra.mxu0 %v992
        %1031 = vmatprep.subr.mxu0 0.0
        %1032 = vmatpush1.msra.mxu0 %v993
        %1033 = vmatprep.subr.mxu0 0.0
        %1034 = vmatpush1.msra.mxu0 0.0
        %1035 = vmatprep.subr.mxu0 0.0
        %1036 = vmatpush1.msra.mxu0 0.0
        %1037 = vmatprep.subr.mxu0 0.0
        %1038 = vmatpush1.msra.mxu0 0.0
        %1039 = vmatprep.subr.mxu0 0.0
        %1040 = vmatpush1.msra.mxu0 0.0
        %1041 = vmatprep.subr.mxu0 0.0
        %1042 = vmatpush1.msra.mxu0 0.0
        %1043 = vmatprep.subr.mxu0 0.0
        %1044 = vmatpush1.msra.mxu0 0.0
        %1045 = vmatprep.subr.mxu0 0.0
        %1046 = vmatpush1.msra.mxu0 0.0
        %1047 = vmatprep.subr.mxu0 0.0
        %1048 = vmatpush1.msra.mxu0 0.0
        %1049 = vmatprep.subr.mxu0 0.0
        %1050 = vmatpush1.msra.mxu0 0.0
        %1051 = vmatprep.subr.mxu0 0.0
        %1052 = vmatpush1.msra.mxu0 0.0
        %1053 = vmatprep.subr.mxu0 0.0
        %1054 = vmatpush1.msra.mxu0 0.0
        %1055 = vmatprep.subr.mxu0 0.0
        %1056 = vmatpush1.msra.mxu0 0.0
        %1057 = vmatprep.subr.mxu0 0.0
        %1058 = vmatpush1.msra.mxu0 0.0
        %1059 = vmatprep.subr.mxu0 0.0
        %1060 = vmatpush1.msra.mxu0 0.0
        %1061 = vmatprep.subr.mxu0 0.0
        %1062 = vmatpush1.msra.mxu0 0.0
        %1063 = vmatprep.subr.mxu0 0.0
        %1064 = vmatpush1.msra.mxu0 0.0
        %1065 = vmatprep.mubr.f32.mxu0 0.0
        %1066 = vmatmul.mubr.f32.gmra.mrb[0].mxu0 %v977
        %v1067 = vpop.f32.mrb[0].mxu0
        %v1068 = vadd.f32 %v999, %v1067
        %v1069 = vpop.f32.mrb[0].mxu0
        %1070 = vdwg.mxu0
        %v1071 = vtanh.pop %v1068
        %v1072 = vld [vmem:[#allocation15] sm:$0xff]
        %v1073 = vld [vmem:[#allocation15 + $0x8] sm:$0xff]
        %v1074 = vld [vmem:[#allocation15 + $0x10] sm:$0xff]
        %v1075 = vld [vmem:[#allocation15 + $0x18] sm:$0xff]
        %v1076 = vld [vmem:[#allocation15 + $0x20] sm:$0xff]
        %v1077 = vld [vmem:[#allocation15 + $0x28] sm:$0xff]
        %v1078 = vld [vmem:[#allocation15 + $0x30] sm:$0xff]
        %v1079 = vld [vmem:[#allocation15 + $0x38] sm:$0xff]
        %v1080 = vld [vmem:[#allocation15 + $0x40] sm:$0xff]
        %v1081 = vld [vmem:[#allocation15 + $0x48] sm:$0xff]
        %v1082 = vld [vmem:[#allocation15 + $0x50] sm:$0xff]
        %v1083 = vld [vmem:[#allocation15 + $0x58] sm:$0xff]
        %v1084 = vld [vmem:[#allocation15 + $0x60] sm:$0xff]
        %v1085 = vld [vmem:[#allocation15 + $0x68] sm:$0xff]
        %v1086 = vld [vmem:[#allocation15 + $0x70] sm:$0xff]
        %v1087 = vld [vmem:[#allocation15 + $0x78] sm:$0xff]
        %v1088 = vld [vmem:[%s13] sm:$0x1]
        %v1090 = vlaneseq
        %v1091 = vshrl.u32 %v1090, 7
        %v1092 = vsub.s32 0, %v1091
        %v1093 = vrot.slane %v1088, %v1092
        %1095 = vmatprep.subr.mxu0 0.0
        %1096 = vmatpush1.msra.mxu0 %v1072
        %1097 = vmatprep.subr.mxu0 0.0
        %1098 = vmatpush1.msra.mxu0 %v1073
        %1099 = vmatprep.subr.mxu0 0.0
        %1100 = vmatpush1.msra.mxu0 %v1074
        %1101 = vmatprep.subr.mxu0 0.0
        %1102 = vmatpush1.msra.mxu0 %v1075
        %1103 = vmatprep.subr.mxu0 0.0
        %1104 = vmatpush1.msra.mxu0 %v1076
        %1105 = vmatprep.subr.mxu0 0.0
        %1106 = vmatpush1.msra.mxu0 %v1077
        %1107 = vmatprep.subr.mxu0 0.0
        %1108 = vmatpush1.msra.mxu0 %v1078
        %1109 = vmatprep.subr.mxu0 0.0
        %1110 = vmatpush1.msra.mxu0 %v1079
        %1111 = vmatprep.subr.mxu0 0.0
        %1112 = vmatpush1.msra.mxu0 %v1080
        %1113 = vmatprep.subr.mxu0 0.0
        %1114 = vmatpush1.msra.mxu0 %v1081
        %1115 = vmatprep.subr.mxu0 0.0
        %1116 = vmatpush1.msra.mxu0 %v1082
        %1117 = vmatprep.subr.mxu0 0.0
        %1118 = vmatpush1.msra.mxu0 %v1083
        %1119 = vmatprep.subr.mxu0 0.0
        %1120 = vmatpush1.msra.mxu0 %v1084
        %1121 = vmatprep.subr.mxu0 0.0
        %1122 = vmatpush1.msra.mxu0 %v1085
        %1123 = vmatprep.subr.mxu0 0.0
        %1124 = vmatpush1.msra.mxu0 %v1086
        %1125 = vmatprep.subr.mxu0 0.0
        %1126 = vmatpush1.msra.mxu0 %v1087
        %1127 = vmatprep.subr.mxu0 0.0
        %1128 = vmatpush1.msra.mxu0 0.0
        %1129 = vmatprep.subr.mxu0 0.0
        %1130 = vmatpush1.msra.mxu0 0.0
        %1131 = vmatprep.subr.mxu0 0.0
        %1132 = vmatpush1.msra.mxu0 0.0
        %1133 = vmatprep.subr.mxu0 0.0
        %1134 = vmatpush1.msra.mxu0 0.0
        %1135 = vmatprep.subr.mxu0 0.0
        %1136 = vmatpush1.msra.mxu0 0.0
        %1137 = vmatprep.subr.mxu0 0.0
        %1138 = vmatpush1.msra.mxu0 0.0
        %1139 = vmatprep.subr.mxu0 0.0
        %1140 = vmatpush1.msra.mxu0 0.0
        %1141 = vmatprep.subr.mxu0 0.0
        %1142 = vmatpush1.msra.mxu0 0.0
        %1143 = vmatprep.subr.mxu0 0.0
        %1144 = vmatpush1.msra.mxu0 0.0
        %1145 = vmatprep.subr.mxu0 0.0
        %1146 = vmatpush1.msra.mxu0 0.0
        %1147 = vmatprep.subr.mxu0 0.0
        %1148 = vmatpush1.msra.mxu0 0.0
        %1149 = vmatprep.subr.mxu0 0.0
        %1150 = vmatpush1.msra.mxu0 0.0
        %1151 = vmatprep.subr.mxu0 0.0
        %1152 = vmatpush1.msra.mxu0 0.0
        %1153 = vmatprep.subr.mxu0 0.0
        %1154 = vmatpush1.msra.mxu0 0.0
        %1155 = vmatprep.subr.mxu0 0.0
        %1156 = vmatpush1.msra.mxu0 0.0
        %1157 = vmatprep.subr.mxu0 0.0
        %1158 = vmatpush1.msra.mxu0 0.0
        %1159 = vmatprep.mubr.f32.mxu0 0.0
        %1160 = vmatmul.mubr.f32.gmra.mrb[0].mxu0 %v1071
        %v1161 = vpop.f32.mrb[0].mxu0
        %v1162 = vadd.f32 %v1093, %v1161
        %v1163 = vpop.f32.mrb[0].mxu0
        %1164 = vdwg.mxu0
        %1165 = vst [vmem:[%s607] sm:$0xff] %v1162
        %s1166 = sand.u32 %s350, 1
        %s1167 = scalar_lea.sflag [#allocation5], %s1166
        %s1168 = sand.u32 %s350, 1
        %s1169 = smul.addr %s1168, 8
        %s1170 = scalar_lea.vmem [#allocation17], %s1169
        // Predicated region
        $region109: #{tpu_custom_call.1} parent=75 // pred_check
          %p1171 = pneg %p360
        $region110: #{tpu_custom_call.1} parent=75 // pred_check_branch
          %1173 = sbr.rel (%p1171) target = $region112
        $region111: #{tpu_custom_call.1} parent=75 // pred_region
          %s1175 = ssub.s32 128, 128
          %1176 = vsyncadd %s1167, %s1175
          %s1177 = smul.addr %s38, 128
          %s1178 = scalar_lea.hbm %s14, %s1177
          %s1180 = sshll.u32 %s1170, 4
          %s1181 = int_to_ptr.vmem [resolvable:$true] %s1180
          %1183 = dma.vmem_to_hbm [thread:$0]  %s1181, 128, %s1178, %s1167
        $region112: #{tpu_custom_call.1} parent=75 // pred_fallthru
          _
      $region76: #{tpu_custom_call.1} parent=5 // pred_fallthru
        _
      %p1184 = scmp.le.s32.totalorder 2, %s33
      // Predicated region
      $region113: #{tpu_custom_call.1} parent=5 // pred_check
        %p1185 = pneg %p1184
      $region114: #{tpu_custom_call.1} parent=5 // pred_check_branch
        %1187 = sbr.rel (%p1185) target = $region116
      $region115: #{tpu_custom_call.1} parent=5 // pred_region
        %s1188 = ssub.s32 %s33, 2
        // Predicated region
        $region117: #{tpu_custom_call.1} parent=115 // pred_check
          %p1189 = pneg %p366
        $region118: #{tpu_custom_call.1} parent=115 // pred_check_branch
          %1191 = sbr.rel (%p1189) target = $region120
        $region119: #{tpu_custom_call.1} parent=115 // pred_region
          %s1192 = sand.u32 %s351, 1
          %s1193 = scalar_lea.sflag [#allocation5], %s1192
          %s1194 = sand.u32 %s351, 1
          %s1195 = smul.addr %s1194, 8
          %s1196 = scalar_lea.vmem [#allocation17], %s1195
          %1197 = dma.done %s1193, 128
        $region120: #{tpu_custom_call.1} parent=115 // pred_fallthru
          _
      $region116: #{tpu_custom_call.1} parent=5 // pred_fallthru
        _
    $region6: #{tpu_custom_call.1} parent=1 // loop_footer
      %s37 = sadd.s32 1, %s33
    $region7: #{tpu_custom_call.1} parent=1 // loop_footer_branch
      %32 = sbr.rel target = $region3
    $region8: #{tpu_custom_call.1} parent=1 // loop_exit
      _
    %1198 = vsyncpa [#allocation4], 1
    %s1199 = scalar_lea.sflag [#allocation4], 1
    %1200 = vsyncpa %s1199, 1
    %1201 = vsyncpa [#allocation7], 1
    %s1202 = scalar_lea.sflag [#allocation7], 1
    %1203 = vsyncpa %s1202, 1
    %1204 = vsyncpa [#allocation10], 1
    %1205 = vsyncpa [#allocation13], 1
    %1206 = vsyncpa [#allocation16], 1
    %1207 = vsyncpa [#allocation5], 1
    %s1208 = scalar_lea.sflag [#allocation5], 1
    %1209 = vsyncpa %s1208, 1

</llo_original>
